<compile_context>
chip_gen: v6e
topology: v6e:2x2x1
jax: 0.10.0
libtpu: 0.0.40
codegen_flags: <defaults>
</compile_context>

<pallas_src>
import functools

import jax
import jax.numpy as jnp
import numpy as np
from jax import lax
from jax.experimental import pallas as pl
from jax.experimental.pallas import tpu as pltpu


def _round_up(x, m):
    return (x + m - 1) // m * m


# ----------------------------------------------------------------------------
# In-kernel helpers
# ----------------------------------------------------------------------------
def _zero_halo(ref, h, w):
    """Zero only the halo border of a (Bt, H+2, Wp, C) padded scratch."""
    bt, hp, wp, c = ref.shape
    z_row = jnp.zeros((bt, 1, wp, c), ref.dtype)
    ref[:, 0:1, :, :] = z_row                       # top padding row
    ref[:, h + 1:h + 2, :, :] = z_row               # bottom padding row
    ref[:, :, 0:1, :] = jnp.zeros((bt, hp, 1, c), ref.dtype)          # left col
    ref[:, :, w + 1:wp, :] = jnp.zeros((bt, hp, wp - (w + 1), c), ref.dtype)  # right cols (+align pad)


def _dw3x3(src_ref, w_ref, *, stride, ho, wo):
    """Depthwise 3x3 conv; 9 taps read directly from the padded VMEM scratch.

    src_ref: (Bt, Hp, Wp, C) zero-halo padded source.
    w_ref  : (9, 1, C) per-channel tap weights (BN scale folded in).
    Returns (Bt, ho, wo, C) float32.
    """
    def tap(ky, kx):
        if stride == 1:
            v = src_ref[:, ky:ky + ho, kx:kx + wo, :]
        else:
            v = src_ref[:, pl.ds(ky, ho, stride), pl.ds(kx, wo, stride), :]
        return v * w_ref[ky * 3 + kx]

    # Three partial accumulators keep the VALU dependence chains short.
    r0 = tap(0, 0) + tap(0, 1) + tap(0, 2)
    r1 = tap(1, 0) + tap(1, 1) + tap(1, 2)
    r2 = tap(2, 0) + tap(2, 1) + tap(2, 2)
    return r0 + (r1 + r2)


# ----------------------------------------------------------------------------
# Fused kernels (one batch tile per grid step; everything stays on-chip)
# ----------------------------------------------------------------------------
def _inverted_residual_s1_kernel(x_ref, w1_ref, b1_ref, wdw_ref, bdw_ref,
                                 wf_ref, bf_ref, o_ref, tp_ref):
    """stride == 1: out = channel_shuffle(concat(x1, branch2(x2)), 2)."""
    bt, h, w, cin = x_ref.shape
    cb = w1_ref.shape[1]
    out_c = wf_ref.shape[1]
    m = bt * h * w

    x4d = x_ref[...]                          # (Bt, H, W, Cin) f32
    x2d = x4d.reshape(m, cin)
    xa = x2d.astype(jnp.bfloat16)             # bf16 MXU operand

    # branch2 pw1 (+folded BN) + ReLU.  Rows of w1 for the passthrough half of
    # the input channels are zero, so no lane-slicing of x is needed.
    t = jnp.dot(xa, w1_ref[...], preferred_element_type=jnp.float32) + b1_ref[...]
    t = jnp.maximum(t, 0.0)

    # branch2 depthwise 3x3 (pad=1, folded BN): zero only the halo border, then
    # overwrite the interior; taps are formed in-kernel (no HBM tap tensor).
    _zero_halo(tp_ref, h, w)
    tp_ref[:, 1:h + 1, 1:w + 1, :] = t.reshape(bt, h, w, cb)
    d = _dw3x3(tp_ref, wdw_ref, stride=1, ho=h, wo=w) + bdw_ref[...]

    # Fused final matmul over K = cin + cb.  Even output columns = passthrough
    # x1 (0/1 embed), odd = branch2 pw2 — i.e. the result is already
    # concat + channel_shuffle.  ReLU only on the branch2 (odd) columns.
    cat = jnp.concatenate(
        [xa, d.reshape(m, cb).astype(jnp.bfloat16)], axis=-1)
    y = jnp.dot(cat, wf_ref[...], preferred_element_type=jnp.float32) + bf_ref[...]
    col = lax.broadcasted_iota(jnp.int32, (1, out_c), 1)
    y = jnp.where((col % 2) == 1, jnp.maximum(y, 0.0), y)
    o_ref[...] = y.reshape(bt, h * w, out_c)


def _inverted_residual_s2_kernel(x_ref, w1_ref, b1_ref, wdw2_ref, bdw2_ref,
                                 wdw1_ref, bdw1_ref, wf_ref, bf_ref,
                                 o_ref, xp_ref, tp_ref, *, stride):
    """stride > 1: out = channel_shuffle(concat(branch1(x), branch2(x)), 2)."""
    bt, h, w, cin = x_ref.shape
    cb = w1_ref.shape[1]
    out_c = wf_ref.shape[1]
    ho = (h + 2 - 3) // stride + 1
    wo = (w + 2 - 3) // stride + 1
    m_in = bt * h * w
    m_out = bt * ho * wo

    x4d = x_ref[...]
    x2d = x4d.reshape(m_in, cin)
    xa = x2d.astype(jnp.bfloat16)

    # branch2 pw1 (+folded BN) + ReLU.
    t = jnp.dot(xa, w1_ref[...], preferred_element_type=jnp.float32) + b1_ref[...]
    t = jnp.maximum(t, 0.0)

    # Pad both depthwise sources into VMEM scratch (halo-only zeroing).
    _zero_halo(xp_ref, h, w)
    xp_ref[:, 1:h + 1, 1:w + 1, :] = x4d
    _zero_halo(tp_ref, h, w)
    tp_ref[:, 1:h + 1, 1:w + 1, :] = t.reshape(bt, h, w, cb)

    # TODO(synk): phase-split scratch for contiguous stride-2 tap reads.
    d1 = _dw3x3(xp_ref, wdw1_ref, stride=stride, ho=ho, wo=wo) + bdw1_ref[...]
    d2 = _dw3x3(tp_ref, wdw2_ref, stride=stride, ho=ho, wo=wo) + bdw2_ref[...]

    # Final 1x1 convs of BOTH branches fused into ONE matmul (K = cin + cb);
    # the weight columns are interleaved so the output is already
    # channel-shuffled (even = branch1, odd = branch2); both branches end in
    # ReLU, so a shared ReLU is exact.
    cat = jnp.concatenate(
        [d1.reshape(m_out, cin).astype(jnp.bfloat16),
         d2.reshape(m_out, cb).astype(jnp.bfloat16)], axis=-1)
    y = jnp.dot(cat, wf_ref[...], preferred_element_type=jnp.float32) + bf_ref[...]
    o_ref[...] = jnp.maximum(y, 0.0).reshape(bt, ho * wo, out_c)


# ----------------------------------------------------------------------------
# Parameter prep (BN folding, weight re-layout, column interleaving, bf16 cast)
# ----------------------------------------------------------------------------
def _fold_bn(gamma, beta, mean, var, eps=1e-5):
    scale = gamma / jnp.sqrt(var + eps)
    bias = beta - mean * scale
    return (scale.reshape(1, -1).astype(jnp.float32),
            bias.reshape(1, -1).astype(jnp.float32))


def _init_bn(key, c):
    k1, k2, k3, k4 = jax.random.split(key, 4)
    gamma = jax.random.uniform(k1, (c,), jnp.float32, 0.5, 1.5)
    beta = 0.1 * jax.random.normal(k2, (c,), jnp.float32)
    mean = 0.1 * jax.random.normal(k3, (c,), jnp.float32)
    var = jax.random.uniform(k4, (c,), jnp.float32, 0.5, 1.5)
    return gamma, beta, mean, var


def _pick_batch_tile(n, bytes_per_img, budget=24 << 20):
    """Largest divisor of n that fits a ~24 MiB VMEM budget while keeping
    >= 2 grid steps (megacore on v7x); the budget stays under the 32 MiB scoped
    default on all generations (v7x physical VMEM is 64 MiB)."""
    max_bt = max(1, budget // max(bytes_per_img, 1))
    best = 1
    for bt in range(1, n + 1):
        if n % bt == 0 and bt <= max_bt and n // bt >= 2:
            best = bt
    return best


class InvertedResidualPallas:
    """Pallas port of ShuffleNetV2 InvertedResidual (eval-mode BN), fully fused."""

    def __init__(self, in_channels, out_channels, stride, key):
        if not 1 <= stride <= 3:
            raise ValueError("Illegal stride value.")
        branch_features = out_channels // 2
        if stride == 1 and in_channels != branch_features << 1:
            raise ValueError("Invalid combination of stride/in_channels/out_channels.")
        self.stride = stride
        self.in_channels = in_channels
        self.branch_features = branch_features
        self.out_c = _round_up(2 * branch_features, 128)   # lane-dense padded out channels
        cb = branch_features
        cin_b2 = in_channels if stride > 1 else branch_features

        keys = jax.random.split(key, 10)
        # Raw PyTorch-layout parameters (OIHW conv weights, BN (gamma,beta,mean,var)).
        self.raw = {}
        if stride > 1:
            self.raw["b1_dw_w"] = 0.3 * jax.random.normal(keys[0], (in_channels, 1, 3, 3), jnp.float32)
            self.raw["b1_bn1"] = _init_bn(keys[1], in_channels)
            self.raw["b1_conv_w"] = 0.3 * jax.random.normal(keys[2], (cb, in_channels, 1, 1), jnp.float32)
            self.raw["b1_bn2"] = _init_bn(keys[3], cb)
        self.raw["b2_conv1_w"] = 0.3 * jax.random.normal(keys[4], (cb, cin_b2, 1, 1), jnp.float32)
        self.raw["b2_bn1"] = _init_bn(keys[5], cb)
        self.raw["b2_dw_w"] = 0.3 * jax.random.normal(keys[6], (cb, 1, 3, 3), jnp.float32)
        self.raw["b2_bn2"] = _init_bn(keys[7], cb)
        self.raw["b2_conv2_w"] = 0.3 * jax.random.normal(keys[8], (cb, cb, 1, 1), jnp.float32)
        self.raw["b2_bn3"] = _init_bn(keys[9], cb)
        self._prepare_kernel_params()

    def _prepare_kernel_params(self):
        r = self.raw
        cb = self.branch_features
        cin = self.in_channels
        out_c = self.out_c

        def pw(w4d):   # (Cout, Cin, 1, 1) -> (Cin, Cout)
            return jnp.transpose(w4d[:, :, 0, 0], (1, 0))

        def dwk(w4d):  # (C, 1, 3, 3) -> (9, 1, C), row-major over (ky, kx)
            return jnp.transpose(w4d[:, 0, :, :], (1, 2, 0)).reshape(9, 1, w4d.shape[0])

        # branch2: fold BN scales into conv weights; keep only biases.
        s1, b1 = _fold_bn(*r["b2_bn1"])
        s2, b2 = _fold_bn(*r["b2_bn2"])
        s3, b3 = _fold_bn(*r["b2_bn3"])
        w1 = pw(r["b2_conv1_w"]) * s1        # (cin_b2, cb)
        wdw2 = dwk(r["b2_dw_w"]) * s2        # (9, 1, cb)
        w2 = pw(r["b2_conv2_w"]) * s3        # (cb, cb)

        even = 2 * jnp.arange(cb)
        odd = even + 1

        if self.stride == 1:
            # pw1 sees only the second half of the input channels -> zero rows on top.
            w1f = jnp.concatenate([jnp.zeros((cb, cb), jnp.float32), w1], axis=0)
            # Final fused matmul weights (K = cin + cb), columns interleaved so the
            # output is already concat + channel_shuffle (even=passthrough, odd=branch2).
            ef = jnp.zeros((cin, out_c), jnp.float32).at[jnp.arange(cb), even].set(1.0)
            w2o = jnp.zeros((cb, out_c), jnp.float32).at[:, odd].set(w2)
            wf = jnp.concatenate([ef, w2o], axis=0)
            bf = jnp.zeros((1, out_c), jnp.float32).at[:, odd].set(b3)
            self.p = dict(w1=w1f.astype(jnp.bfloat16), b1=b1,
                          wdw=wdw2, bdw=b2,
                          wf=wf.astype(jnp.bfloat16), bf=bf)
        else:
            sd1, bd1 = _fold_bn(*r["b1_bn1"])
            sp1, bp1 = _fold_bn(*r["b1_bn2"])
            wdw1 = dwk(r["b1_dw_w"]) * sd1   # (9, 1, cin)
            wp1 = pw(r["b1_conv_w"]) * sp1   # (cin, cb)
            wc1 = jnp.zeros((cin, out_c), jnp.float32).at[:, even].set(wp1)
            wc2 = jnp.zeros((cb, out_c), jnp.float32).at[:, odd].set(w2)
            wf = jnp.concatenate([wc1, wc2], axis=0)
            bf = (jnp.zeros((1, out_c), jnp.float32)
                  .at[:, even].set(bp1).at[:, odd].set(b3))
            self.p = dict(w1=w1.astype(jnp.bfloat16), b1=b1,
                          wdw2=wdw2, bdw2=b2, wdw1=wdw1, bdw1=bd1,
                          wf=wf.astype(jnp.bfloat16), bf=bf)

    # -- fused forward passes --------------------------------------------------
    def _forward_s1(self, x_nhwc):
        p = self.p
        n, h, w, cin = x_nhwc.shape
        cb = self.branch_features
        out_c = self.out_c
        m = h * w
        wp = _round_up(w + 2, 8)
        bytes_per_img = 4 * (2 * h * w * cin + 2 * m * out_c + (h + 2) * wp * cb)
        bt = _pick_batch_tile(n, bytes_per_img)
        return pl.pallas_call(
            _inverted_residual_s1_kernel,
            out_shape=jax.ShapeDtypeStruct((n, m, out_c), jnp.float32),
            grid=(n // bt,),
            in_specs=[
                pl.BlockSpec((bt, h, w, cin), lambda i: (i, 0, 0, 0)),
                pl.BlockSpec((cin, cb), lambda i: (0, 0)),
                pl.BlockSpec((1, cb), lambda i: (0, 0)),
                pl.BlockSpec((9, 1, cb), lambda i: (0, 0, 0)),
                pl.BlockSpec((1, cb), lambda i: (0, 0)),
                pl.BlockSpec((cin + cb, out_c), lambda i: (0, 0)),
                pl.BlockSpec((1, out_c), lambda i: (0, 0)),
            ],
            out_specs=pl.BlockSpec((bt, m, out_c), lambda i: (i, 0, 0)),
            scratch_shapes=[pltpu.VMEM((bt, h + 2, wp, cb), jnp.float32)],
            compiler_params=pltpu.CompilerParams(
                dimension_semantics=("parallel",)),
        )(x_nhwc, p["w1"], p["b1"], p["wdw"], p["bdw"], p["wf"], p["bf"])

    def _forward_s2(self, x_nhwc):
        p = self.p
        n, h, w, cin = x_nhwc.shape
        cb = self.branch_features
        out_c = self.out_c
        s = self.stride
        ho = (h + 2 - 3) // s + 1
        wo = (w + 2 - 3) // s + 1
        m = ho * wo
        wp = _round_up(w + 2, 8)
        bytes_per_img = 4 * (2 * h * w * cin + 2 * m * out_c + (h + 2) * wp * (cin + cb))
        bt = _pick_batch_tile(n, bytes_per_img)
        kernel = functools.partial(_inverted_residual_s2_kernel, stride=s)
        return pl.pallas_call(
            kernel,
            out_shape=jax.ShapeDtypeStruct((n, m, out_c), jnp.float32),
            grid=(n // bt,),
            in_specs=[
                pl.BlockSpec((bt, h, w, cin), lambda i: (i, 0, 0, 0)),
                pl.BlockSpec((cin, cb), lambda i: (0, 0)),
                pl.BlockSpec((1, cb), lambda i: (0, 0)),
                pl.BlockSpec((9, 1, cb), lambda i: (0, 0, 0)),
                pl.BlockSpec((1, cb), lambda i: (0, 0)),
                pl.BlockSpec((9, 1, cin), lambda i: (0, 0, 0)),
                pl.BlockSpec((1, cin), lambda i: (0, 0)),
                pl.BlockSpec((cin + cb, out_c), lambda i: (0, 0)),
                pl.BlockSpec((1, out_c), lambda i: (0, 0)),
            ],
            out_specs=pl.BlockSpec((bt, m, out_c), lambda i: (i, 0, 0)),
            scratch_shapes=[pltpu.VMEM((bt, h + 2, wp, cin), jnp.float32),
                            pltpu.VMEM((bt, h + 2, wp, cb), jnp.float32)],
            compiler_params=pltpu.CompilerParams(
                dimension_semantics=("parallel",)),
        )(x_nhwc, p["w1"], p["b1"], p["wdw2"], p["bdw2"],
          p["wdw1"], p["bdw1"], p["wf"], p["bf"])

    def __call__(self, x_nchw):
        # NCHW in/out (PyTorch convention); channels-last + pixel-major inside.
        x = jnp.transpose(x_nchw, (0, 2, 3, 1)).astype(jnp.float32)
        n, h, w, _ = x.shape
        cb = self.branch_features
        if self.stride == 1:
            y = self._forward_s1(x)
            ho, wo = h, w
        else:
            y = self._forward_s2(x)
            ho = (h + 2 - 3) // self.stride + 1
            wo = (w + 2 - 3) // self.stride + 1
        y = y[..., :2 * cb].reshape(n, ho, wo, 2 * cb)   # drop lane-pad columns
        return jnp.transpose(y, (0, 3, 1, 2))


# ----------------------------------------------------------------------------
# Pure-JAX reference (mirrors the PyTorch forward, eval-mode BN) for checking
# ----------------------------------------------------------------------------
def _ref_forward(module, x_nchw):
    r = module.raw
    s = module.stride
    eps = 1e-5

    def conv(x, w, stride=1, padding=0, groups=1):
        return lax.conv_general_dilated(
            x, w, (stride, stride), [(padding, padding)] * 2,
            dimension_numbers=("NCHW", "OIHW", "NCHW"),
            feature_group_count=groups, precision=lax.Precision.HIGHEST)

    def bn(x, p):
        g, b, m, v = p
        sc = (g / jnp.sqrt(v + eps))[None, :, None, None]
        return (x - m[None, :, None, None]) * sc + b[None, :, None, None]

    def branch2(x):
        t = jax.nn.relu(bn(conv(x, r["b2_conv1_w"]), r["b2_bn1"]))
        t = bn(conv(t, r["b2_dw_w"], stride=s, padding=1, groups=t.shape[1]), r["b2_bn2"])
        return jax.nn.relu(bn(conv(t, r["b2_conv2_w"]), r["b2_bn3"]))

    if s == 1:
        cb = module.branch_features
        y = jnp.concatenate([x_nchw[:, :cb], branch2(x_nchw[:, cb:])], axis=1)
    else:
        t = bn(conv(x_nchw, r["b1_dw_w"], stride=s, padding=1, groups=x_nchw.shape[1]),
               r["b1_bn1"])
        b1 = jax.nn.relu(bn(conv(t, r["b1_conv_w"]), r["b1_bn2"]))
        y = jnp.concatenate([b1, branch2(x_nchw)], axis=1)

    n, c, h, w = y.shape
    y = y.reshape(n, 2, c // 2, h, w).transpose(0, 2, 1, 3, 4).reshape(n, c, h, w)
    return y


if __name__ == "__main__":
    key = jax.random.PRNGKey(0)
    kx, kp1, kp2 = jax.random.split(key, 3)

    x = jax.random.normal(kx, (2, 4, 16, 16), jnp.float32)

    # bf16 MXU operands -> slightly looser tolerance than the f32 reference.
    RTOL, ATOL = 2e-2, 2e-2

    # stride=1 block (identity passthrough + branch2)
    m1 = InvertedResidualPallas(in_channels=4, out_channels=4, stride=1, key=kp1)
    y1 = jax.block_until_ready(m1(x))
    np.testing.assert_allclose(np.asarray(y1), np.asarray(_ref_forward(m1, x)),
                               rtol=RTOL, atol=ATOL)
    assert y1.shape == (2, 4, 16, 16)

    # stride=2 downsampling block (branch1 + branch2)
    m2 = InvertedResidualPallas(in_channels=4, out_channels=8, stride=2, key=kp2)
    y2 = jax.block_until_ready(m2(x))
    np.testing.assert_allclose(np.asarray(y2), np.asarray(_ref_forward(m2, x)),
                               rtol=RTOL, atol=ATOL)
    assert y2.shape == (2, 8, 8, 8)

    print("KERNEL_OK")
</pallas_src>

<mosaic_0001>
module attributes {stable_mosaic.version = 11 : i64} {
  func.func @_inverted_residual_s1_kernel(%arg0: i32, %arg1: memref<1x16x16x4xf32, #tpu.memory_space<vmem>>, %arg2: memref<4x2xbf16, #tpu.memory_space<vmem>>, %arg3: memref<1x2xf32, #tpu.memory_space<vmem>>, %arg4: memref<9x1x2xf32, #tpu.memory_space<vmem>>, %arg5: memref<1x2xf32, #tpu.memory_space<vmem>>, %arg6: memref<6x128xbf16, #tpu.memory_space<vmem>>, %arg7: memref<1x128xf32, #tpu.memory_space<vmem>>, %arg8: memref<1x256x128xf32, #tpu.memory_space<vmem>>, %arg9: memref<1x18x24x2xf32, #tpu.memory_space<vmem>>) attributes {dimension_semantics = [#tpu.dimension_semantics<parallel>], iteration_bounds = array<i64: 2>, scalar_prefetch = 0 : i64, scratch_operands = 1 : i64, tpu.core_type = #tpu.core_type<tc>, window_params = [{transform_indices = @transform_0, window_bounds = array<i64: 1, 16, 16, 4>}, {pipeline_mode = #tpu.pipeline_mode<synchronous>, transform_indices = @transform_1, window_bounds = array<i64: 4, 2>}, {pipeline_mode = #tpu.pipeline_mode<synchronous>, transform_indices = @transform_2, window_bounds = array<i64: 1, 2>}, {pipeline_mode = #tpu.pipeline_mode<synchronous>, transform_indices = @transform_3, window_bounds = array<i64: 9, 1, 2>}, {pipeline_mode = #tpu.pipeline_mode<synchronous>, transform_indices = @transform_4, window_bounds = array<i64: 1, 2>}, {pipeline_mode = #tpu.pipeline_mode<synchronous>, transform_indices = @transform_5, window_bounds = array<i64: 6, 128>}, {pipeline_mode = #tpu.pipeline_mode<synchronous>, transform_indices = @transform_6, window_bounds = array<i64: 1, 128>}, {transform_indices = @transform_7, window_bounds = array<i64: 1, 256, 128>}]} {
    %c0 = arith.constant 0 : index
    %c0_0 = arith.constant 0 : index
    %c0_1 = arith.constant 0 : index
    %c0_2 = arith.constant 0 : index
    %0 = vector.load %arg1[%c0, %c0_0, %c0_1, %c0_2] : memref<1x16x16x4xf32, #tpu.memory_space<vmem>>, vector<1x16x16x4xf32>
    %1 = vector.shape_cast %0 : vector<1x16x16x4xf32> to vector<256x4xf32>
    %2 = arith.truncf %1 : vector<256x4xf32> to vector<256x4xbf16>
    %c0_3 = arith.constant 0 : index
    %c0_4 = arith.constant 0 : index
    %3 = vector.load %arg2[%c0_3, %c0_4] : memref<4x2xbf16, #tpu.memory_space<vmem>>, vector<4x2xbf16>
    %cst = arith.constant dense<0.000000e+00> : vector<256x2xf32>
    %4 = tpu.matmul %2, %3, %cst {dimension_numbers = #tpu.dot_dimension_numbers<[1], [0], [0], [1], [0, 0, 1, 1], [], []>} : vector<256x4xbf16>, vector<4x2xbf16>, vector<256x2xf32> -> vector<256x2xf32>
    %c0_5 = arith.constant 0 : index
    %c0_6 = arith.constant 0 : index
    %5 = vector.load %arg3[%c0_5, %c0_6] : memref<1x2xf32, #tpu.memory_space<vmem>>, vector<1x2xf32>
    %6 = vector.broadcast %5 : vector<1x2xf32> to vector<256x2xf32>
    %7 = arith.addf %4, %6 : vector<256x2xf32>
    %cst_7 = arith.constant 0.000000e+00 : f32
    %8 = vector.broadcast %cst_7 : f32 to vector<256x2xf32>
    %9 = arith.maximumf %7, %8 : vector<256x2xf32>
    %cst_8 = arith.constant 0.000000e+00 : f32
    %10 = vector.broadcast %cst_8 : f32 to vector<1x1x24x2xf32>
    %c0_9 = arith.constant 0 : index
    %c0_10 = arith.constant 0 : index
    %c0_11 = arith.constant 0 : index
    %c0_12 = arith.constant 0 : index
    %11 = vector.load %arg9[%c0_9, %c0_10, %c0_11, %c0_12] : memref<1x18x24x2xf32, #tpu.memory_space<vmem>>, vector<1x1x24x2xf32>
    tpu.vector_store %arg9[%c0_9, %c0_10, %c0_11, %c0_12], %10 {strides = array<i32>} : memref<1x18x24x2xf32, #tpu.memory_space<vmem>>, vector<1x1x24x2xf32>,
    %c0_13 = arith.constant 0 : index
    %c17 = arith.constant 17 : index
    %c0_14 = arith.constant 0 : index
    %c0_15 = arith.constant 0 : index
    %12 = vector.load %arg9[%c0_13, %c17, %c0_14, %c0_15] : memref<1x18x24x2xf32, #tpu.memory_space<vmem>>, vector<1x1x24x2xf32>
    tpu.vector_store %arg9[%c0_13, %c17, %c0_14, %c0_15], %10 {strides = array<i32>} : memref<1x18x24x2xf32, #tpu.memory_space<vmem>>, vector<1x1x24x2xf32>,
    %cst_16 = arith.constant 0.000000e+00 : f32
    %13 = vector.broadcast %cst_16 : f32 to vector<1x18x1x2xf32>
    %c0_17 = arith.constant 0 : index
    %c0_18 = arith.constant 0 : index
    %c0_19 = arith.constant 0 : index
    %c0_20 = arith.constant 0 : index
    %14 = vector.load %arg9[%c0_17, %c0_18, %c0_19, %c0_20] : memref<1x18x24x2xf32, #tpu.memory_space<vmem>>, vector<1x18x1x2xf32>
    tpu.vector_store %arg9[%c0_17, %c0_18, %c0_19, %c0_20], %13 {strides = array<i32>} : memref<1x18x24x2xf32, #tpu.memory_space<vmem>>, vector<1x18x1x2xf32>,
    %cst_21 = arith.constant 0.000000e+00 : f32
    %15 = vector.broadcast %cst_21 : f32 to vector<1x18x7x2xf32>
    %c0_22 = arith.constant 0 : index
    %c0_23 = arith.constant 0 : index
    %c17_24 = arith.constant 17 : index
    %c0_25 = arith.constant 0 : index
    %16 = vector.load %arg9[%c0_22, %c0_23, %c17_24, %c0_25] : memref<1x18x24x2xf32, #tpu.memory_space<vmem>>, vector<1x18x7x2xf32>
    tpu.vector_store %arg9[%c0_22, %c0_23, %c17_24, %c0_25], %15 {strides = array<i32>} : memref<1x18x24x2xf32, #tpu.memory_space<vmem>>, vector<1x18x7x2xf32>,
    %17 = vector.shape_cast %9 : vector<256x2xf32> to vector<1x16x16x2xf32>
    %c0_26 = arith.constant 0 : index
    %c1 = arith.constant 1 : index
    %c1_27 = arith.constant 1 : index
    %c0_28 = arith.constant 0 : index
    %18 = vector.load %arg9[%c0_26, %c1, %c1_27, %c0_28] : memref<1x18x24x2xf32, #tpu.memory_space<vmem>>, vector<1x16x16x2xf32>
    tpu.vector_store %arg9[%c0_26, %c1, %c1_27, %c0_28], %17 {strides = array<i32>} : memref<1x18x24x2xf32, #tpu.memory_space<vmem>>, vector<1x16x16x2xf32>,
    %c0_29 = arith.constant 0 : index
    %c0_30 = arith.constant 0 : index
    %c0_31 = arith.constant 0 : index
    %c0_32 = arith.constant 0 : index
    %19 = vector.load %arg9[%c0_29, %c0_30, %c0_31, %c0_32] : memref<1x18x24x2xf32, #tpu.memory_space<vmem>>, vector<1x16x16x2xf32>
    %c0_33 = arith.constant 0 : index
    %c0_34 = arith.constant 0 : index
    %c0_35 = arith.constant 0 : index
    %20 = vector.load %arg4[%c0_33, %c0_34, %c0_35] : memref<9x1x2xf32, #tpu.memory_space<vmem>>, vector<1x1x2xf32>
    %21 = vector.shape_cast %20 : vector<1x1x2xf32> to vector<1x2xf32>
    %22 = vector.shape_cast %21 : vector<1x2xf32> to vector<1x1x1x2xf32>
    %23 = vector.broadcast %22 : vector<1x1x1x2xf32> to vector<1x16x16x2xf32>
    %24 = arith.mulf %19, %23 : vector<1x16x16x2xf32>
    %c0_36 = arith.constant 0 : index
    %c0_37 = arith.constant 0 : index
    %c1_38 = arith.constant 1 : index
    %c0_39 = arith.constant 0 : index
    %25 = vector.load %arg9[%c0_36, %c0_37, %c1_38, %c0_39] : memref<1x18x24x2xf32, #tpu.memory_space<vmem>>, vector<1x16x16x2xf32>
    %c1_40 = arith.constant 1 : index
    %c0_41 = arith.constant 0 : index
    %c0_42 = arith.constant 0 : index
    %26 = vector.load %arg4[%c1_40, %c0_41, %c0_42] : memref<9x1x2xf32, #tpu.memory_space<vmem>>, vector<1x1x2xf32>
    %27 = vector.shape_cast %26 : vector<1x1x2xf32> to vector<1x2xf32>
    %28 = vector.shape_cast %27 : vector<1x2xf32> to vector<1x1x1x2xf32>
    %29 = vector.broadcast %28 : vector<1x1x1x2xf32> to vector<1x16x16x2xf32>
    %30 = arith.mulf %25, %29 : vector<1x16x16x2xf32>
    %31 = arith.addf %24, %30 : vector<1x16x16x2xf32>
    %c0_43 = arith.constant 0 : index
    %c0_44 = arith.constant 0 : index
    %c2 = arith.constant 2 : index
    %c0_45 = arith.constant 0 : index
    %32 = vector.load %arg9[%c0_43, %c0_44, %c2, %c0_45] : memref<1x18x24x2xf32, #tpu.memory_space<vmem>>, vector<1x16x16x2xf32>
    %c2_46 = arith.constant 2 : index
    %c0_47 = arith.constant 0 : index
    %c0_48 = arith.constant 0 : index
    %33 = vector.load %arg4[%c2_46, %c0_47, %c0_48] : memref<9x1x2xf32, #tpu.memory_space<vmem>>, vector<1x1x2xf32>
    %34 = vector.shape_cast %33 : vector<1x1x2xf32> to vector<1x2xf32>
    %35 = vector.shape_cast %34 : vector<1x2xf32> to vector<1x1x1x2xf32>
    %36 = vector.broadcast %35 : vector<1x1x1x2xf32> to vector<1x16x16x2xf32>
    %37 = arith.mulf %32, %36 : vector<1x16x16x2xf32>
    %38 = arith.addf %31, %37 : vector<1x16x16x2xf32>
    %c0_49 = arith.constant 0 : index
    %c1_50 = arith.constant 1 : index
    %c0_51 = arith.constant 0 : index
    %c0_52 = arith.constant 0 : index
    %39 = vector.load %arg9[%c0_49, %c1_50, %c0_51, %c0_52] : memref<1x18x24x2xf32, #tpu.memory_space<vmem>>, vector<1x16x16x2xf32>
    %c3 = arith.constant 3 : index
    %c0_53 = arith.constant 0 : index
    %c0_54 = arith.constant 0 : index
    %40 = vector.load %arg4[%c3, %c0_53, %c0_54] : memref<9x1x2xf32, #tpu.memory_space<vmem>>, vector<1x1x2xf32>
    %41 = vector.shape_cast %40 : vector<1x1x2xf32> to vector<1x2xf32>
    %42 = vector.shape_cast %41 : vector<1x2xf32> to vector<1x1x1x2xf32>
    %43 = vector.broadcast %42 : vector<1x1x1x2xf32> to vector<1x16x16x2xf32>
    %44 = arith.mulf %39, %43 : vector<1x16x16x2xf32>
    %c0_55 = arith.constant 0 : index
    %c1_56 = arith.constant 1 : index
    %c1_57 = arith.constant 1 : index
    %c0_58 = arith.constant 0 : index
    %45 = vector.load %arg9[%c0_55, %c1_56, %c1_57, %c0_58] : memref<1x18x24x2xf32, #tpu.memory_space<vmem>>, vector<1x16x16x2xf32>
    %c4 = arith.constant 4 : index
    %c0_59 = arith.constant 0 : index
    %c0_60 = arith.constant 0 : index
    %46 = vector.load %arg4[%c4, %c0_59, %c0_60] : memref<9x1x2xf32, #tpu.memory_space<vmem>>, vector<1x1x2xf32>
    %47 = vector.shape_cast %46 : vector<1x1x2xf32> to vector<1x2xf32>
    %48 = vector.shape_cast %47 : vector<1x2xf32> to vector<1x1x1x2xf32>
    %49 = vector.broadcast %48 : vector<1x1x1x2xf32> to vector<1x16x16x2xf32>
    %50 = arith.mulf %45, %49 : vector<1x16x16x2xf32>
    %51 = arith.addf %44, %50 : vector<1x16x16x2xf32>
    %c0_61 = arith.constant 0 : index
    %c1_62 = arith.constant 1 : index
    %c2_63 = arith.constant 2 : index
    %c0_64 = arith.constant 0 : index
    %52 = vector.load %arg9[%c0_61, %c1_62, %c2_63, %c0_64] : memref<1x18x24x2xf32, #tpu.memory_space<vmem>>, vector<1x16x16x2xf32>
    %c5 = arith.constant 5 : index
    %c0_65 = arith.constant 0 : index
    %c0_66 = arith.constant 0 : index
    %53 = vector.load %arg4[%c5, %c0_65, %c0_66] : memref<9x1x2xf32, #tpu.memory_space<vmem>>, vector<1x1x2xf32>
    %54 = vector.shape_cast %53 : vector<1x1x2xf32> to vector<1x2xf32>
    %55 = vector.shape_cast %54 : vector<1x2xf32> to vector<1x1x1x2xf32>
    %56 = vector.broadcast %55 : vector<1x1x1x2xf32> to vector<1x16x16x2xf32>
    %57 = arith.mulf %52, %56 : vector<1x16x16x2xf32>
    %58 = arith.addf %51, %57 : vector<1x16x16x2xf32>
    %c0_67 = arith.constant 0 : index
    %c2_68 = arith.constant 2 : index
    %c0_69 = arith.constant 0 : index
    %c0_70 = arith.constant 0 : index
    %59 = vector.load %arg9[%c0_67, %c2_68, %c0_69, %c0_70] : memref<1x18x24x2xf32, #tpu.memory_space<vmem>>, vector<1x16x16x2xf32>
    %c6 = arith.constant 6 : index
    %c0_71 = arith.constant 0 : index
    %c0_72 = arith.constant 0 : index
    %60 = vector.load %arg4[%c6, %c0_71, %c0_72] : memref<9x1x2xf32, #tpu.memory_space<vmem>>, vector<1x1x2xf32>
    %61 = vector.shape_cast %60 : vector<1x1x2xf32> to vector<1x2xf32>
    %62 = vector.shape_cast %61 : vector<1x2xf32> to vector<1x1x1x2xf32>
    %63 = vector.broadcast %62 : vector<1x1x1x2xf32> to vector<1x16x16x2xf32>
    %64 = arith.mulf %59, %63 : vector<1x16x16x2xf32>
    %c0_73 = arith.constant 0 : index
    %c2_74 = arith.constant 2 : index
    %c1_75 = arith.constant 1 : index
    %c0_76 = arith.constant 0 : index
    %65 = vector.load %arg9[%c0_73, %c2_74, %c1_75, %c0_76] : memref<1x18x24x2xf32, #tpu.memory_space<vmem>>, vector<1x16x16x2xf32>
    %c7 = arith.constant 7 : index
    %c0_77 = arith.constant 0 : index
    %c0_78 = arith.constant 0 : index
    %66 = vector.load %arg4[%c7, %c0_77, %c0_78] : memref<9x1x2xf32, #tpu.memory_space<vmem>>, vector<1x1x2xf32>
    %67 = vector.shape_cast %66 : vector<1x1x2xf32> to vector<1x2xf32>
    %68 = vector.shape_cast %67 : vector<1x2xf32> to vector<1x1x1x2xf32>
    %69 = vector.broadcast %68 : vector<1x1x1x2xf32> to vector<1x16x16x2xf32>
    %70 = arith.mulf %65, %69 : vector<1x16x16x2xf32>
    %71 = arith.addf %64, %70 : vector<1x16x16x2xf32>
    %c0_79 = arith.constant 0 : index
    %c2_80 = arith.constant 2 : index
    %c2_81 = arith.constant 2 : index
    %c0_82 = arith.constant 0 : index
    %72 = vector.load %arg9[%c0_79, %c2_80, %c2_81, %c0_82] : memref<1x18x24x2xf32, #tpu.memory_space<vmem>>, vector<1x16x16x2xf32>
    %c8 = arith.constant 8 : index
    %c0_83 = arith.constant 0 : index
    %c0_84 = arith.constant 0 : index
    %73 = vector.load %arg4[%c8, %c0_83, %c0_84] : memref<9x1x2xf32, #tpu.memory_space<vmem>>, vector<1x1x2xf32>
    %74 = vector.shape_cast %73 : vector<1x1x2xf32> to vector<1x2xf32>
    %75 = vector.shape_cast %74 : vector<1x2xf32> to vector<1x1x1x2xf32>
    %76 = vector.broadcast %75 : vector<1x1x1x2xf32> to vector<1x16x16x2xf32>
    %77 = arith.mulf %72, %76 : vector<1x16x16x2xf32>
    %78 = arith.addf %71, %77 : vector<1x16x16x2xf32>
    %79 = arith.addf %58, %78 : vector<1x16x16x2xf32>
    %80 = arith.addf %38, %79 : vector<1x16x16x2xf32>
    %c0_85 = arith.constant 0 : index
    %c0_86 = arith.constant 0 : index
    %81 = vector.load %arg5[%c0_85, %c0_86] : memref<1x2xf32, #tpu.memory_space<vmem>>, vector<1x2xf32>
    %82 = vector.shape_cast %81 : vector<1x2xf32> to vector<1x1x1x2xf32>
    %83 = vector.broadcast %82 : vector<1x1x1x2xf32> to vector<1x16x16x2xf32>
    %84 = arith.addf %80, %83 : vector<1x16x16x2xf32>
    %85 = vector.shape_cast %84 : vector<1x16x16x2xf32> to vector<256x2xf32>
    %86 = arith.truncf %85 : vector<256x2xf32> to vector<256x2xbf16>
    %87 = tpu.concatenate %2, %86 in 1 : vector<256x4xbf16>, vector<256x2xbf16> -> vector<256x6xbf16>
    %c0_87 = arith.constant 0 : index
    %c0_88 = arith.constant 0 : index
    %88 = vector.load %arg6[%c0_87, %c0_88] : memref<6x128xbf16, #tpu.memory_space<vmem>>, vector<6x128xbf16>
    %cst_89 = arith.constant dense<0.000000e+00> : vector<256x128xf32>
    %89 = tpu.matmul %87, %88, %cst_89 {dimension_numbers = #tpu.dot_dimension_numbers<[1], [0], [0], [1], [0, 0, 1, 1], [], []>} : vector<256x6xbf16>, vector<6x128xbf16>, vector<256x128xf32> -> vector<256x128xf32>
    %c0_90 = arith.constant 0 : index
    %c0_91 = arith.constant 0 : index
    %90 = vector.load %arg7[%c0_90, %c0_91] : memref<1x128xf32, #tpu.memory_space<vmem>>, vector<1x128xf32>
    %91 = vector.broadcast %90 : vector<1x128xf32> to vector<256x128xf32>
    %92 = arith.addf %89, %91 : vector<256x128xf32>
    %93 = tpu.iota {dimensions = array<i32: 1>} : vector<1x128xi32>
    %c2_i32 = arith.constant 2 : i32
    %c0_i32 = arith.constant 0 : i32
    %94 = arith.cmpi eq, %c2_i32, %c0_i32 : i32
    %c1_i32 = arith.constant 1 : i32
    %95 = arith.select %94, %c1_i32, %c2_i32 : i32
    %96 = vector.broadcast %95 : i32 to vector<1x128xi32>
    %97 = arith.remsi %93, %96 : vector<1x128xi32>
    %c0_i32_92 = arith.constant 0 : i32
    %98 = vector.broadcast %c0_i32_92 : i32 to vector<1x128xi32>
    %99 = arith.cmpi ne, %97, %98 : vector<1x128xi32>
    %c0_i32_93 = arith.constant 0 : i32
    %100 = vector.broadcast %c0_i32_93 : i32 to vector<1x128xi32>
    %101 = arith.cmpi slt, %97, %100 : vector<1x128xi32>
    %c0_i32_94 = arith.constant 0 : i32
    %102 = arith.cmpi slt, %95, %c0_i32_94 : i32
    %103 = vector.broadcast %102 : i1 to vector<1x128xi1>
    %104 = vector.broadcast %103 : vector<1x128xi1> to vector<1x128xi1>
    %105 = arith.xori %101, %104 : vector<1x128xi1>
    %106 = arith.andi %105, %99 : vector<1x128xi1>
    %107 = vector.broadcast %95 : i32 to vector<1x128xi32>
    %108 = arith.addi %97, %107 : vector<1x128xi32>
    %109 = arith.select %106, %108, %97 : vector<1x128xi1>, vector<1x128xi32>
    %c1_i32_95 = arith.constant 1 : i32
    %110 = vector.broadcast %c1_i32_95 : i32 to vector<1x128xi32>
    %111 = arith.cmpi eq, %109, %110 : vector<1x128xi32>
    %cst_96 = arith.constant 0.000000e+00 : f32
    %112 = vector.broadcast %cst_96 : f32 to vector<256x128xf32>
    %113 = arith.maximumf %92, %112 : vector<256x128xf32>
    %114 = vector.shape_cast %111 : vector<1x128xi1> to vector<1x128xi1>
    %115 = vector.broadcast %114 : vector<1x128xi1> to vector<256x128xi1>
    %116 = arith.select %115, %113, %92 : vector<256x128xi1>, vector<256x128xf32>
    %117 = vector.shape_cast %116 : vector<256x128xf32> to vector<1x256x128xf32>
    %c0_97 = arith.constant 0 : index
    %c0_98 = arith.constant 0 : index
    %c0_99 = arith.constant 0 : index
    %118 = vector.load %arg8[%c0_97, %c0_98, %c0_99] : memref<1x256x128xf32, #tpu.memory_space<vmem>>, vector<1x256x128xf32>
    tpu.vector_store %arg8[%c0_97, %c0_98, %c0_99], %117 {strides = array<i32>} : memref<1x256x128xf32, #tpu.memory_space<vmem>>, vector<1x256x128xf32>,
    return
  }
  func.func @transform_0(%arg0: i32) -> (i32, i32, i32, i32) {
    %c0_i32 = arith.constant 0 : i32
    %c0_i32_0 = arith.constant 0 : i32
    %c0_i32_1 = arith.constant 0 : i32
    %c0_i32_2 = arith.constant 0 : i32
    return %arg0, %c0_i32, %c0_i32_0, %c0_i32_1 : i32, i32, i32, i32
  }
  func.func @transform_1(%arg0: i32) -> (i32, i32) {
    %c0_i32 = arith.constant 0 : i32
    %c0_i32_0 = arith.constant 0 : i32
    %c0_i32_1 = arith.constant 0 : i32
    return %c0_i32, %c0_i32_0 : i32, i32
  }
  func.func @transform_2(%arg0: i32) -> (i32, i32) {
    %c0_i32 = arith.constant 0 : i32
    %c0_i32_0 = arith.constant 0 : i32
    %c0_i32_1 = arith.constant 0 : i32
    return %c0_i32, %c0_i32_0 : i32, i32
  }
  func.func @transform_3(%arg0: i32) -> (i32, i32, i32) {
    %c0_i32 = arith.constant 0 : i32
    %c0_i32_0 = arith.constant 0 : i32
    %c0_i32_1 = arith.constant 0 : i32
    %c0_i32_2 = arith.constant 0 : i32
    return %c0_i32, %c0_i32_0, %c0_i32_1 : i32, i32, i32
  }
  func.func @transform_4(%arg0: i32) -> (i32, i32) {
    %c0_i32 = arith.constant 0 : i32
    %c0_i32_0 = arith.constant 0 : i32
    %c0_i32_1 = arith.constant 0 : i32
    return %c0_i32, %c0_i32_0 : i32, i32
  }
  func.func @transform_5(%arg0: i32) -> (i32, i32) {
    %c0_i32 = arith.constant 0 : i32
    %c0_i32_0 = arith.constant 0 : i32
    %c0_i32_1 = arith.constant 0 : i32
    return %c0_i32, %c0_i32_0 : i32, i32
  }
  func.func @transform_6(%arg0: i32) -> (i32, i32) {
    %c0_i32 = arith.constant 0 : i32
    %c0_i32_0 = arith.constant 0 : i32
    %c0_i32_1 = arith.constant 0 : i32
    return %c0_i32, %c0_i32_0 : i32, i32
  }
  func.func @transform_7(%arg0: i32) -> (i32, i32, i32) {
    %c0_i32 = arith.constant 0 : i32
    %c0_i32_0 = arith.constant 0 : i32
    %c0_i32_1 = arith.constant 0 : i32
    return %arg0, %c0_i32, %c0_i32_0 : i32, i32, i32
  }
}

</mosaic_0001>

<llo_original>
// kernel: tpu_custom_call.1
$region0: #{tpu_custom_call.1}
  #allocation0 [shape = 'u32[]', space=smem, size = 0x4, offset = 0x4, fixed_abs, tag = 'smem constant byte address 0x4 - core index']
  #allocation1 [shape = 'u32[144,128]{1,0:T(1,128)}', space=vmem, size = 0x12000, scoped, tag = 'internal scratch']
  #allocation2 [shape = 'f32[1,18,24,2]{3,2,1,0:T(8,128)}', space=vmem, size = 0x36000, scoped, tag = 'scratch operand']
  %s0 = inlined_call_operand.vmem [shape: f32[2,16,16,4], index: 0, kind: input, shape index: {}]
  %s1 = inlined_call_operand.vmem [shape: bf16[4,2], index: 1, kind: input, shape index: {}]
  %s2 = inlined_call_operand.vmem [shape: f32[1,2], index: 2, kind: input, shape index: {}]
  %s3 = inlined_call_operand.vmem [shape: f32[9,1,2], index: 3, kind: input, shape index: {}]
  %s4 = inlined_call_operand.vmem [shape: f32[1,2], index: 4, kind: input, shape index: {}]
  %s5 = inlined_call_operand.vmem [shape: bf16[6,128], index: 5, kind: input, shape index: {}]
  %s6 = inlined_call_operand.vmem [shape: f32[1,128], index: 6, kind: input, shape index: {}]
  %s7 = inlined_call_operand.hbm [shape: f32[2,256,128], index: 7, kind: output, shape index: {}]
  %s8 = sld [smem:[#allocation0]]
  $region61: #{tpu_custom_call.1} parent=0
    _
  %s10 = ssub.s32 1, %s8
  %s11 = scalar_select 0, %s10, %s8
  $region1: #{tpu_custom_call.1} parent=0
    #allocation3 [shape = 'u8[262144]{0}', space=vmem, size = 0x40000, scoped, tag = 'output window, operand 0']
    #allocation4 [shape = 's32[2]{0}', space=sflag, size = 0x8, scoped, tag = 'scoped memory for tpu_custom_call.1']
    %12 = vsyncpa [#allocation4], 0
    %s13 = scalar_lea.sflag [#allocation4], 1
    %14 = vsyncpa %s13, 0
    loop: start=0, step=1, limit=4
    $region2: #{tpu_custom_call.1} parent=1 // loop_pre_header
      _
    $region3: #{tpu_custom_call.1} parent=1 // loop_header
      %s16 = sphi 0, %s20
      %p17 = scmp.ge.s32.totalorder %s16, 4
      %s26 = sphi 0, %s28
      %s29 = sphi 0, %s26
      %s30 = sphi 0, %s29
      %s46 = sphi 0, %s30
      %s50 = sphi 0, %s50
      %s52 = sphi 0, %s50
      %s53 = sphi 0, %s52
      %s67 = sphi 0, %s53
      %s71 = sphi 0, %s71
      %s73 = sphi 0, %s71
      %s74 = sphi 0, %s73
      %s88 = sphi 0, %s74
      %s92 = sphi 0, %s92
      %s94 = sphi 0, %s92
      %s95 = sphi 0, %s94
      %s109 = sphi 0, %s95
      %s113 = sphi 0, %s113
      %s115 = sphi 0, %s113
      %s116 = sphi 0, %s115
      %s130 = sphi 0, %s116
      %s134 = sphi 0, %s134
      %s136 = sphi 0, %s134
      %s137 = sphi 0, %s136
      %s151 = sphi 0, %s137
      %s155 = sphi 0, %s155
      %s157 = sphi 0, %s155
      %s158 = sphi 0, %s157
      %s172 = sphi 0, %s158
      %s178 = sphi 0, %s180
      %s181 = sphi 0, %s178
      %s182 = sphi 0, %s181
      %s198 = sphi 0, %s182
    $region4: #{tpu_custom_call.1} parent=1 // loop_header_branch
      %19 = sbr.rel (%p17) target = $region8
    $region5: #{tpu_custom_call.1} parent=1 // loop_body
      %s21 = ssub.s32 %s16, 1
      %s22 = ssub.s32 %s16, 2
      %s23 = sadd.s32 %s16, 1
      %s24 = ssub.s32 %s16, %s23
      %p25 = scmp.eq.s32.totalorder %s24, 0
      %s27 = sadd.s32 %s26, 1
      %s28 = scalar_select %p25, %s26, %s27
      %p31 = pneg %p25
      %p32 = scmp.eq.s32.totalorder %s16, 1
      %p33 = por %p31, %p32
      %p34 = scmp.ne.s32.totalorder %s26, %s29
      %p35 = scmp.eq.s32.totalorder %s16, 0
      %p36 = por %p34, %p35
      %p37 = scmp.ne.s32.totalorder %s26, %s29
      %p38 = scmp.eq.s32.totalorder %s21, 1
      %p39 = por %p37, %p38
      %p40 = scmp.ne.s32.totalorder %s29, %s30
      %p41 = scmp.eq.s32.totalorder %s21, 0
      %p42 = por %p40, %p41
      %p43 = scmp.ne.s32.totalorder %s29, %s30
      %p44 = scmp.eq.s32.totalorder %s22, 1
      %p45 = por %p43, %p44
      %p47 = scmp.ne.s32.totalorder %s30, %s46
      %p48 = scmp.eq.s32.totalorder %s22, 0
      %p49 = por %p47, %p48
      %s51 = sadd.s32 %s50, 1
      %p54 = scmp.eq.s32.totalorder %s16, 1
      %p55 = scmp.ne.s32.totalorder %s50, %s52
      %p56 = scmp.eq.s32.totalorder %s16, 0
      %p57 = por %p55, %p56
      %p58 = scmp.ne.s32.totalorder %s50, %s52
      %p59 = scmp.eq.s32.totalorder %s21, 1
      %p60 = por %p58, %p59
      %p61 = scmp.ne.s32.totalorder %s52, %s53
      %p62 = scmp.eq.s32.totalorder %s21, 0
      %p63 = por %p61, %p62
      %p64 = scmp.ne.s32.totalorder %s52, %s53
      %p65 = scmp.eq.s32.totalorder %s22, 1
      %p66 = por %p64, %p65
      %p68 = scmp.ne.s32.totalorder %s53, %s67
      %p69 = scmp.eq.s32.totalorder %s22, 0
      %p70 = por %p68, %p69
      %s72 = sadd.s32 %s71, 1
      %p75 = scmp.eq.s32.totalorder %s16, 1
      %p76 = scmp.ne.s32.totalorder %s71, %s73
      %p77 = scmp.eq.s32.totalorder %s16, 0
      %p78 = por %p76, %p77
      %p79 = scmp.ne.s32.totalorder %s71, %s73
      %p80 = scmp.eq.s32.totalorder %s21, 1
      %p81 = por %p79, %p80
      %p82 = scmp.ne.s32.totalorder %s73, %s74
      %p83 = scmp.eq.s32.totalorder %s21, 0
      %p84 = por %p82, %p83
      %p85 = scmp.ne.s32.totalorder %s73, %s74
      %p86 = scmp.eq.s32.totalorder %s22, 1
      %p87 = por %p85, %p86
      %p89 = scmp.ne.s32.totalorder %s74, %s88
      %p90 = scmp.eq.s32.totalorder %s22, 0
      %p91 = por %p89, %p90
      %s93 = sadd.s32 %s92, 1
      %p96 = scmp.eq.s32.totalorder %s16, 1
      %p97 = scmp.ne.s32.totalorder %s92, %s94
      %p98 = scmp.eq.s32.totalorder %s16, 0
      %p99 = por %p97, %p98
      %p100 = scmp.ne.s32.totalorder %s92, %s94
      %p101 = scmp.eq.s32.totalorder %s21, 1
      %p102 = por %p100, %p101
      %p103 = scmp.ne.s32.totalorder %s94, %s95
      %p104 = scmp.eq.s32.totalorder %s21, 0
      %p105 = por %p103, %p104
      %p106 = scmp.ne.s32.totalorder %s94, %s95
      %p107 = scmp.eq.s32.totalorder %s22, 1
      %p108 = por %p106, %p107
      %p110 = scmp.ne.s32.totalorder %s95, %s109
      %p111 = scmp.eq.s32.totalorder %s22, 0
      %p112 = por %p110, %p111
      %s114 = sadd.s32 %s113, 1
      %p117 = scmp.eq.s32.totalorder %s16, 1
      %p118 = scmp.ne.s32.totalorder %s113, %s115
      %p119 = scmp.eq.s32.totalorder %s16, 0
      %p120 = por %p118, %p119
      %p121 = scmp.ne.s32.totalorder %s113, %s115
      %p122 = scmp.eq.s32.totalorder %s21, 1
      %p123 = por %p121, %p122
      %p124 = scmp.ne.s32.totalorder %s115, %s116
      %p125 = scmp.eq.s32.totalorder %s21, 0
      %p126 = por %p124, %p125
      %p127 = scmp.ne.s32.totalorder %s115, %s116
      %p128 = scmp.eq.s32.totalorder %s22, 1
      %p129 = por %p127, %p128
      %p131 = scmp.ne.s32.totalorder %s116, %s130
      %p132 = scmp.eq.s32.totalorder %s22, 0
      %p133 = por %p131, %p132
      %s135 = sadd.s32 %s134, 1
      %p138 = scmp.eq.s32.totalorder %s16, 1
      %p139 = scmp.ne.s32.totalorder %s134, %s136
      %p140 = scmp.eq.s32.totalorder %s16, 0
      %p141 = por %p139, %p140
      %p142 = scmp.ne.s32.totalorder %s134, %s136
      %p143 = scmp.eq.s32.totalorder %s21, 1
      %p144 = por %p142, %p143
      %p145 = scmp.ne.s32.totalorder %s136, %s137
      %p146 = scmp.eq.s32.totalorder %s21, 0
      %p147 = por %p145, %p146
      %p148 = scmp.ne.s32.totalorder %s136, %s137
      %p149 = scmp.eq.s32.totalorder %s22, 1
      %p150 = por %p148, %p149
      %p152 = scmp.ne.s32.totalorder %s137, %s151
      %p153 = scmp.eq.s32.totalorder %s22, 0
      %p154 = por %p152, %p153
      %s156 = sadd.s32 %s155, 1
      %p159 = scmp.eq.s32.totalorder %s16, 1
      %p160 = scmp.ne.s32.totalorder %s155, %s157
      %p161 = scmp.eq.s32.totalorder %s16, 0
      %p162 = por %p160, %p161
      %p163 = scmp.ne.s32.totalorder %s155, %s157
      %p164 = scmp.eq.s32.totalorder %s21, 1
      %p165 = por %p163, %p164
      %p166 = scmp.ne.s32.totalorder %s157, %s158
      %p167 = scmp.eq.s32.totalorder %s21, 0
      %p168 = por %p166, %p167
      %p169 = scmp.ne.s32.totalorder %s157, %s158
      %p170 = scmp.eq.s32.totalorder %s22, 1
      %p171 = por %p169, %p170
      %p173 = scmp.ne.s32.totalorder %s158, %s172
      %p174 = scmp.eq.s32.totalorder %s22, 0
      %p175 = por %p173, %p174
      %s176 = ssub.s32 %s16, %s23
      %p177 = scmp.eq.s32.totalorder %s176, 0
      %s179 = sadd.s32 %s178, 1
      %s180 = scalar_select %p177, %s178, %s179
      %p183 = pneg %p177
      %p184 = scmp.eq.s32.totalorder %s16, 1
      %p185 = por %p183, %p184
      %p186 = scmp.ne.s32.totalorder %s178, %s181
      %p187 = scmp.eq.s32.totalorder %s16, 0
      %p188 = por %p186, %p187
      %p189 = scmp.ne.s32.totalorder %s178, %s181
      %p190 = scmp.eq.s32.totalorder %s21, 1
      %p191 = por %p189, %p190
      %p192 = scmp.ne.s32.totalorder %s181, %s182
      %p193 = scmp.eq.s32.totalorder %s21, 0
      %p194 = por %p192, %p193
      %p195 = scmp.ne.s32.totalorder %s181, %s182
      %p196 = scmp.eq.s32.totalorder %s22, 1
      %p197 = por %p195, %p196
      %p199 = scmp.ne.s32.totalorder %s182, %s198
      %p200 = scmp.eq.s32.totalorder %s22, 0
      %p201 = por %p199, %p200
      %p202 = scmp.le.s32.totalorder 1, %s16
      %p203 = scmp.lt.s32.totalorder %s16, 3
      %p204 = pnand %p202, %p203
      %p205 = pneg %p204
      // Predicated region
      $region9: #{tpu_custom_call.1} parent=5 // pred_check
        _
      $region10: #{tpu_custom_call.1} parent=5 // pred_check_branch
        %207 = sbr.rel (%p204) target = $region12
      $region11: #{tpu_custom_call.1} parent=5 // pred_region
        %s208 = ssub.s32 %s16, 1
        // Predicated region
        $region13: #{tpu_custom_call.1} parent=11 // pred_check
          %p209 = pneg %p63
        $region14: #{tpu_custom_call.1} parent=11 // pred_check_branch
          %211 = sbr.rel (%p209) target = $region16
        $region15: #{tpu_custom_call.1} parent=11 // pred_region
          _
        $region16: #{tpu_custom_call.1} parent=11 // pred_fallthru
          _
        // Predicated region
        $region17: #{tpu_custom_call.1} parent=11 // pred_check
          %p212 = pneg %p84
        $region18: #{tpu_custom_call.1} parent=11 // pred_check_branch
          %214 = sbr.rel (%p212) target = $region20
        $region19: #{tpu_custom_call.1} parent=11 // pred_region
          _
        $region20: #{tpu_custom_call.1} parent=11 // pred_fallthru
          _
        // Predicated region
        $region21: #{tpu_custom_call.1} parent=11 // pred_check
          %p215 = pneg %p105
        $region22: #{tpu_custom_call.1} parent=11 // pred_check_branch
          %217 = sbr.rel (%p215) target = $region24
        $region23: #{tpu_custom_call.1} parent=11 // pred_region
          _
        $region24: #{tpu_custom_call.1} parent=11 // pred_fallthru
          _
        // Predicated region
        $region25: #{tpu_custom_call.1} parent=11 // pred_check
          %p218 = pneg %p126
        $region26: #{tpu_custom_call.1} parent=11 // pred_check_branch
          %220 = sbr.rel (%p218) target = $region28
        $region27: #{tpu_custom_call.1} parent=11 // pred_region
          _
        $region28: #{tpu_custom_call.1} parent=11 // pred_fallthru
          _
        // Predicated region
        $region29: #{tpu_custom_call.1} parent=11 // pred_check
          %p221 = pneg %p147
        $region30: #{tpu_custom_call.1} parent=11 // pred_check_branch
          %223 = sbr.rel (%p221) target = $region32
        $region31: #{tpu_custom_call.1} parent=11 // pred_region
          _
        $region32: #{tpu_custom_call.1} parent=11 // pred_fallthru
          _
        // Predicated region
        $region33: #{tpu_custom_call.1} parent=11 // pred_check
          %p224 = pneg %p168
        $region34: #{tpu_custom_call.1} parent=11 // pred_check_branch
          %226 = sbr.rel (%p224) target = $region36
        $region35: #{tpu_custom_call.1} parent=11 // pred_region
          _
        $region36: #{tpu_custom_call.1} parent=11 // pred_fallthru
          _
      $region12: #{tpu_custom_call.1} parent=5 // pred_fallthru
        _
      %p227 = scmp.lt.s32.totalorder %s16, 2
      // Predicated region
      $region37: #{tpu_custom_call.1} parent=5 // pred_check
        %p228 = pneg %p227
      $region38: #{tpu_custom_call.1} parent=5 // pred_check_branch
        %230 = sbr.rel (%p228) target = $region40
      $region39: #{tpu_custom_call.1} parent=5 // pred_region
        // Predicated region
        $region41: #{tpu_custom_call.1} parent=39 // pred_check
          %p231 = pneg %p36
        $region42: #{tpu_custom_call.1} parent=39 // pred_check_branch
          %233 = sbr.rel (%p231) target = $region44
        $region43: #{tpu_custom_call.1} parent=39 // pred_region
          %p234 = scmp.lt.s32.totalorder %s16, 1
          %s235 = scalar_select %p234, %s16, 1
          %s236 = smul.addr %s235, 32
          %s237 = smul.addr %s236, 8
          %s238 = scalar_lea.vmem %s0, %s237
        $region44: #{tpu_custom_call.1} parent=39 // pred_fallthru
          _
      $region40: #{tpu_custom_call.1} parent=5 // pred_fallthru
        _
      %p239 = scmp.le.s32.totalorder 1, %s16
      %p240 = scmp.lt.s32.totalorder %s16, 3
      %p241 = pnand %p239, %p240
      %p242 = pneg %p241
      // Predicated region
      $region45: #{tpu_custom_call.1} parent=5 // pred_check
        _
      $region46: #{tpu_custom_call.1} parent=5 // pred_check_branch
        %244 = sbr.rel (%p241) target = $region48
      $region47: #{tpu_custom_call.1} parent=5 // pred_region
        %s245 = ssub.s32 %s16, 1
        %p246 = scmp.lt.s32.totalorder %s21, 1
        %s247 = scalar_select %p246, %s21, 1
        %s248 = smul.addr %s247, 32
        %s249 = smul.addr %s248, 8
        %s250 = scalar_lea.vmem %s0, %s249
        %p251 = pneg %p42
        %p252 = pneg %p39
        %p253 = pneg %p63
        %p254 = pneg %p60
        %p255 = pneg %p84
        %p256 = pneg %p81
        %p257 = pneg %p105
        %p258 = pneg %p102
        %p259 = pneg %p126
        %p260 = pneg %p123
        %p261 = pneg %p147
        %p262 = pneg %p144
        %p263 = pneg %p168
        %p264 = pneg %p165
        %p265 = pneg %p194
        %p266 = pneg %p191
        %s267 = sand.u32 %s181, 1
        %s268 = scalar_lea.sflag [#allocation4], %s267
        %s269 = sand.u32 %s181, 1
        %s270 = smul.addr %s269, 256
        %s271 = scalar_lea.vmem [#allocation3], %s270
        %p272 = scmp.lt.s32.totalorder %s21, 1
        %s273 = scalar_select %p272, %s21, 1
        %s274 = smul.addr %s273, 32
        %s275 = smul.addr %s274, 8
        %s276 = scalar_lea.vmem %s0, %s275
        %v278 = vld [vmem:[%s276] sm:$0xff]
        %v279 = vld [vmem:[%s276 + $0x8] sm:$0xff]
        %v280 = vld [vmem:[%s276 + $0x10] sm:$0xff]
        %v281 = vld [vmem:[%s276 + $0x18] sm:$0xff]
        %v282 = vld [vmem:[%s276 + $0x20] sm:$0xff]
        %v283 = vld [vmem:[%s276 + $0x28] sm:$0xff]
        %v284 = vld [vmem:[%s276 + $0x30] sm:$0xff]
        %v285 = vld [vmem:[%s276 + $0x38] sm:$0xff]
        %v286 = vld [vmem:[%s276 + $0x40] sm:$0xff]
        %v287 = vld [vmem:[%s276 + $0x48] sm:$0xff]
        %v288 = vld [vmem:[%s276 + $0x50] sm:$0xff]
        %v289 = vld [vmem:[%s276 + $0x58] sm:$0xff]
        %v290 = vld [vmem:[%s276 + $0x60] sm:$0xff]
        %v291 = vld [vmem:[%s276 + $0x68] sm:$0xff]
        %v292 = vld [vmem:[%s276 + $0x70] sm:$0xff]
        %v293 = vld [vmem:[%s276 + $0x78] sm:$0xff]
        %v294 = vld [vmem:[%s276 + $0x80] sm:$0xff]
        %v295 = vld [vmem:[%s276 + $0x88] sm:$0xff]
        %v296 = vld [vmem:[%s276 + $0x90] sm:$0xff]
        %v297 = vld [vmem:[%s276 + $0x98] sm:$0xff]
        %v298 = vld [vmem:[%s276 + $0xa0] sm:$0xff]
        %v299 = vld [vmem:[%s276 + $0xa8] sm:$0xff]
        %v300 = vld [vmem:[%s276 + $0xb0] sm:$0xff]
        %v301 = vld [vmem:[%s276 + $0xb8] sm:$0xff]
        %v302 = vld [vmem:[%s276 + $0xc0] sm:$0xff]
        %v303 = vld [vmem:[%s276 + $0xc8] sm:$0xff]
        %v304 = vld [vmem:[%s276 + $0xd0] sm:$0xff]
        %v305 = vld [vmem:[%s276 + $0xd8] sm:$0xff]
        %v306 = vld [vmem:[%s276 + $0xe0] sm:$0xff]
        %v307 = vld [vmem:[%s276 + $0xe8] sm:$0xff]
        %v308 = vld [vmem:[%s276 + $0xf0] sm:$0xff]
        %v309 = vld [vmem:[%s276 + $0xf8] sm:$0xff]
        %v310 = vpack.c.bf16 %v279, %v278
        %v311 = vpack.c.bf16 %v281, %v280
        %v312 = vpack.c.bf16 %v283, %v282
        %v313 = vpack.c.bf16 %v285, %v284
        %v314 = vpack.c.bf16 %v287, %v286
        %v315 = vpack.c.bf16 %v289, %v288
        %v316 = vpack.c.bf16 %v291, %v290
        %v317 = vpack.c.bf16 %v293, %v292
        %v318 = vpack.c.bf16 %v295, %v294
        %v319 = vpack.c.bf16 %v297, %v296
        %v320 = vpack.c.bf16 %v299, %v298
        %v321 = vpack.c.bf16 %v301, %v300
        %v322 = vpack.c.bf16 %v303, %v302
        %v323 = vpack.c.bf16 %v305, %v304
        %v324 = vpack.c.bf16 %v307, %v306
        %v325 = vpack.c.bf16 %v309, %v308
        %v326 = vld [vmem:[%s1] sm:$0x3]
        %v327 = vld [vmem:[%s2] sm:$0x1]
        %v329 = vlaneseq
        %v330 = vshrl.u32 %v329, 7
        %v331 = vsub.s32 0, %v330
        %v332 = vrot.slane %v327, %v331
        %vm334 = vcmask 31744
        %v336 = vsel %vm334, %v310, 0
        %v339 = vsel %vm334, %v311, 0
        %v342 = vsel %vm334, %v312, 0
        %v345 = vsel %vm334, %v313, 0
        %v348 = vsel %vm334, %v314, 0
        %v351 = vsel %vm334, %v315, 0
        %v354 = vsel %vm334, %v316, 0
        %v357 = vsel %vm334, %v317, 0
        %v360 = vsel %vm334, %v318, 0
        %v363 = vsel %vm334, %v319, 0
        %v366 = vsel %vm334, %v320, 0
        %v369 = vsel %vm334, %v321, 0
        %v372 = vsel %vm334, %v322, 0
        %v375 = vsel %vm334, %v323, 0
        %v378 = vsel %vm334, %v324, 0
        %v381 = vsel %vm334, %v325, 0
        %vm383 = vcmask 1041408
        %v385 = vsel %vm383, %v326, 0
        %387 = vmatprep.subr.bf16.mxu0 0
        %388 = vmatpush1.bf16.msra.mxu0 0
        %389 = vmatprep.subr.bf16.mxu0 0
        %390 = vmatpush1.bf16.msra.mxu0 0
        %391 = vmatprep.subr.bf16.mxu0 0
        %392 = vmatpush1.bf16.msra.mxu0 0
        %393 = vmatprep.subr.bf16.mxu0 0
        %394 = vmatpush1.bf16.msra.mxu0 0
        %395 = vmatprep.subr.bf16.mxu0 0
        %396 = vmatpush1.bf16.msra.mxu0 0
        %397 = vmatprep.subr.bf16.mxu0 0
        %398 = vmatpush1.bf16.msra.mxu0 0
        %399 = vmatprep.subr.bf16.mxu0 0
        %400 = vmatpush1.bf16.msra.mxu0 0
        %401 = vmatprep.subr.bf16.mxu0 0
        %402 = vmatpush1.bf16.msra.mxu0 %v385
        %403 = vmatprep.subr.bf16.mxu0 0
        %404 = vmatpush2.bf16.msra.mxu0 0
        %405 = vmatprep.subr.bf16.mxu0 0
        %406 = vmatpush2.bf16.msra.mxu0 0
        %407 = vmatprep.subr.bf16.mxu0 0
        %408 = vmatpush2.bf16.msra.mxu0 0
        %409 = vmatprep.subr.bf16.mxu0 0
        %410 = vmatpush2.bf16.msra.mxu0 0
        %411 = vmatprep.subr.bf16.mxu0 0
        %412 = vmatpush2.bf16.msra.mxu0 0
        %413 = vmatprep.subr.bf16.mxu0 0
        %414 = vmatpush2.bf16.msra.mxu0 0
        %415 = vmatprep.subr.bf16.mxu0 0
        %416 = vmatpush2.bf16.msra.mxu0 0
        %417 = vmatprep.subr.bf16.mxu0 0
        %418 = vmatpush2.bf16.msra.mxu0 0
        %419 = vmatprep.mubr.bf16.mxu0 0
        %420 = vmatmul.mubr.bf16.gmra.mxu0 %v336
        %v421 = vpop.f32.mrf.mxu0
        %v422 = vadd.f32 %v332, %v421
        %v423 = vpop.f32.mrf.mxu0
        %v424 = vpop.f32.mrf.mxu0
        %v425 = vadd.f32 %v332, %v424
        %v426 = vpop.f32.mrf.mxu0
        %427 = vmatprep.mubr.bf16.mxu0 0
        %428 = vmatmul.mubr.bf16.gmra.mxu0 %v339
        %v429 = vpop.f32.mrf.mxu0
        %v430 = vadd.f32 %v332, %v429
        %v431 = vpop.f32.mrf.mxu0
        %v432 = vpop.f32.mrf.mxu0
        %v433 = vadd.f32 %v332, %v432
        %v434 = vpop.f32.mrf.mxu0
        %435 = vmatprep.mubr.bf16.mxu0 0
        %436 = vmatmul.mubr.bf16.gmra.mxu0 %v342
        %v437 = vpop.f32.mrf.mxu0
        %v438 = vadd.f32 %v332, %v437
        %v439 = vpop.f32.mrf.mxu0
        %v440 = vpop.f32.mrf.mxu0
        %v441 = vadd.f32 %v332, %v440
        %v442 = vpop.f32.mrf.mxu0
        %443 = vmatprep.mubr.bf16.mxu0 0
        %444 = vmatmul.mubr.bf16.gmra.mxu0 %v345
        %v445 = vpop.f32.mrf.mxu0
        %v446 = vadd.f32 %v332, %v445
        %v447 = vpop.f32.mrf.mxu0
        %v448 = vpop.f32.mrf.mxu0
        %v449 = vadd.f32 %v332, %v448
        %v450 = vpop.f32.mrf.mxu0
        %451 = vmatprep.mubr.bf16.mxu0 0
        %452 = vmatmul.mubr.bf16.gmra.mxu0 %v348
        %v453 = vpop.f32.mrf.mxu0
        %v454 = vadd.f32 %v332, %v453
        %v455 = vpop.f32.mrf.mxu0
        %v456 = vpop.f32.mrf.mxu0
        %v457 = vadd.f32 %v332, %v456
        %v458 = vpop.f32.mrf.mxu0
        %459 = vmatprep.mubr.bf16.mxu0 0
        %460 = vmatmul.mubr.bf16.gmra.mxu0 %v351
        %v461 = vpop.f32.mrf.mxu0
        %v462 = vadd.f32 %v332, %v461
        %v463 = vpop.f32.mrf.mxu0
        %v464 = vpop.f32.mrf.mxu0
        %v465 = vadd.f32 %v332, %v464
        %v466 = vpop.f32.mrf.mxu0
        %467 = vmatprep.mubr.bf16.mxu0 0
        %468 = vmatmul.mubr.bf16.gmra.mxu0 %v354
        %v469 = vpop.f32.mrf.mxu0
        %v470 = vadd.f32 %v332, %v469
        %v471 = vpop.f32.mrf.mxu0
        %v472 = vpop.f32.mrf.mxu0
        %v473 = vadd.f32 %v332, %v472
        %v474 = vpop.f32.mrf.mxu0
        %475 = vmatprep.mubr.bf16.mxu0 0
        %476 = vmatmul.mubr.bf16.gmra.mxu0 %v357
        %v477 = vpop.f32.mrf.mxu0
        %v478 = vadd.f32 %v332, %v477
        %v479 = vpop.f32.mrf.mxu0
        %v480 = vpop.f32.mrf.mxu0
        %v481 = vadd.f32 %v332, %v480
        %v482 = vpop.f32.mrf.mxu0
        %483 = vmatprep.mubr.bf16.mxu0 0
        %484 = vmatmul.mubr.bf16.gmra.mxu0 %v360
        %v485 = vpop.f32.mrf.mxu0
        %v486 = vadd.f32 %v332, %v485
        %v487 = vpop.f32.mrf.mxu0
        %v488 = vpop.f32.mrf.mxu0
        %v489 = vadd.f32 %v332, %v488
        %v490 = vpop.f32.mrf.mxu0
        %491 = vmatprep.mubr.bf16.mxu0 0
        %492 = vmatmul.mubr.bf16.gmra.mxu0 %v363
        %v493 = vpop.f32.mrf.mxu0
        %v494 = vadd.f32 %v332, %v493
        %v495 = vpop.f32.mrf.mxu0
        %v496 = vpop.f32.mrf.mxu0
        %v497 = vadd.f32 %v332, %v496
        %v498 = vpop.f32.mrf.mxu0
        %499 = vmatprep.mubr.bf16.mxu0 0
        %500 = vmatmul.mubr.bf16.gmra.mxu0 %v366
        %v501 = vpop.f32.mrf.mxu0
        %v502 = vadd.f32 %v332, %v501
        %v503 = vpop.f32.mrf.mxu0
        %v504 = vpop.f32.mrf.mxu0
        %v505 = vadd.f32 %v332, %v504
        %v506 = vpop.f32.mrf.mxu0
        %507 = vmatprep.mubr.bf16.mxu0 0
        %508 = vmatmul.mubr.bf16.gmra.mxu0 %v369
        %v509 = vpop.f32.mrf.mxu0
        %v510 = vadd.f32 %v332, %v509
        %v511 = vpop.f32.mrf.mxu0
        %v512 = vpop.f32.mrf.mxu0
        %v513 = vadd.f32 %v332, %v512
        %v514 = vpop.f32.mrf.mxu0
        %515 = vmatprep.mubr.bf16.mxu0 0
        %516 = vmatmul.mubr.bf16.gmra.mxu0 %v372
        %v517 = vpop.f32.mrf.mxu0
        %v518 = vadd.f32 %v332, %v517
        %v519 = vpop.f32.mrf.mxu0
        %v520 = vpop.f32.mrf.mxu0
        %v521 = vadd.f32 %v332, %v520
        %v522 = vpop.f32.mrf.mxu0
        %523 = vmatprep.mubr.bf16.mxu0 0
        %524 = vmatmul.mubr.bf16.gmra.mxu0 %v375
        %v525 = vpop.f32.mrf.mxu0
        %v526 = vadd.f32 %v332, %v525
        %v527 = vpop.f32.mrf.mxu0
        %v528 = vpop.f32.mrf.mxu0
        %v529 = vadd.f32 %v332, %v528
        %v530 = vpop.f32.mrf.mxu0
        %531 = vmatprep.mubr.bf16.mxu0 0
        %532 = vmatmul.mubr.bf16.gmra.mxu0 %v378
        %v533 = vpop.f32.mrf.mxu0
        %v534 = vadd.f32 %v332, %v533
        %v535 = vpop.f32.mrf.mxu0
        %v536 = vpop.f32.mrf.mxu0
        %v537 = vadd.f32 %v332, %v536
        %v538 = vpop.f32.mrf.mxu0
        %539 = vmatprep.mubr.bf16.mxu0 0
        %540 = vmatmul.mubr.bf16.gmra.mxu0 %v381
        %v541 = vpop.f32.mrf.mxu0
        %v542 = vadd.f32 %v332, %v541
        %v543 = vpop.f32.mrf.mxu0
        %v544 = vpop.f32.mrf.mxu0
        %v545 = vadd.f32 %v332, %v544
        %v546 = vpop.f32.mrf.mxu0
        %547 = vdwg.mxu0
        %v548 = vmax.f32 %v422, 0.0
        %v549 = vmax.f32 %v425, 0.0
        %v550 = vmax.f32 %v430, 0.0
        %v551 = vmax.f32 %v433, 0.0
        %v552 = vmax.f32 %v438, 0.0
        %v553 = vmax.f32 %v441, 0.0
        %v554 = vmax.f32 %v446, 0.0
        %v555 = vmax.f32 %v449, 0.0
        %v556 = vmax.f32 %v454, 0.0
        %v557 = vmax.f32 %v457, 0.0
        %v558 = vmax.f32 %v462, 0.0
        %v559 = vmax.f32 %v465, 0.0
        %v560 = vmax.f32 %v470, 0.0
        %v561 = vmax.f32 %v473, 0.0
        %v562 = vmax.f32 %v478, 0.0
        %v563 = vmax.f32 %v481, 0.0
        %v564 = vmax.f32 %v486, 0.0
        %v565 = vmax.f32 %v489, 0.0
        %v566 = vmax.f32 %v494, 0.0
        %v567 = vmax.f32 %v497, 0.0
        %v568 = vmax.f32 %v502, 0.0
        %v569 = vmax.f32 %v505, 0.0
        %v570 = vmax.f32 %v510, 0.0
        %v571 = vmax.f32 %v513, 0.0
        %v572 = vmax.f32 %v518, 0.0
        %v573 = vmax.f32 %v521, 0.0
        %v574 = vmax.f32 %v526, 0.0
        %v575 = vmax.f32 %v529, 0.0
        %v576 = vmax.f32 %v534, 0.0
        %v577 = vmax.f32 %v537, 0.0
        %v578 = vmax.f32 %v542, 0.0
        %v579 = vmax.f32 %v545, 0.0
        %vm580 = vcmask 15360
        %581 = vst.msk [vmem:[#allocation2] sm:$0xff] %vm580, 0.0
        %582 = vst.msk [vmem:[#allocation2 + $0x8] sm:$0xff] %vm580, 0.0
        %583 = vst.msk [vmem:[#allocation2 + $0x10] sm:$0xff] %vm580, 0.0
        %s584 = scalar_lea.vmem [#allocation2], 408
        %585 = vst.msk [vmem:[%s584] sm:$0xff] %vm580, 0.0
        %586 = vst.msk [vmem:[%s584 + $0x8] sm:$0xff] %vm580, 0.0
        %587 = vst.msk [vmem:[%s584 + $0x10] sm:$0xff] %vm580, 0.0
        %vm588 = vcmask 8192
        %589 = vst.msk [vmem:[#allocation2] sm:$0x1] %vm588, 0.0
        %590 = vst.msk [vmem:[#allocation2 + $0x18] sm:$0x1] %vm588, 0.0
        %591 = vst.msk [vmem:[#allocation2 + $0x30] sm:$0x1] %vm588, 0.0
        %592 = vst.msk [vmem:[#allocation2 + $0x48] sm:$0x1] %vm588, 0.0
        %593 = vst.msk [vmem:[#allocation2 + $0x60] sm:$0x1] %vm588, 0.0
        %594 = vst.msk [vmem:[#allocation2 + $0x78] sm:$0x1] %vm588, 0.0
        %595 = vst.msk [vmem:[#allocation2 + $0x90] sm:$0x1] %vm588, 0.0
        %596 = vst.msk [vmem:[#allocation2 + $0xa8] sm:$0x1] %vm588, 0.0
        %597 = vst.msk [vmem:[#allocation2 + $0xc0] sm:$0x1] %vm588, 0.0
        %598 = vst.msk [vmem:[#allocation2 + $0xd8] sm:$0x1] %vm588, 0.0
        %599 = vst.msk [vmem:[#allocation2 + $0xf0] sm:$0x1] %vm588, 0.0
        %600 = vst.msk [vmem:[#allocation2 + $0x108] sm:$0x1] %vm588, 0.0
        %601 = vst.msk [vmem:[#allocation2 + $0x120] sm:$0x1] %vm588, 0.0
        %602 = vst.msk [vmem:[#allocation2 + $0x138] sm:$0x1] %vm588, 0.0
        %603 = vst.msk [vmem:[#allocation2 + $0x150] sm:$0x1] %vm588, 0.0
        %604 = vst.msk [vmem:[#allocation2 + $0x168] sm:$0x1] %vm588, 0.0
        %605 = vst.msk [vmem:[#allocation2 + $0x180] sm:$0x1] %vm588, 0.0
        %606 = vst.msk [vmem:[#allocation2 + $0x198] sm:$0x1] %vm588, 0.0
        %vm607 = vcmask 14336
        %608 = vst.msk [vmem:[#allocation2 + $0x11] sm:$0x7f] %vm607, 0.0
        %609 = vst.msk [vmem:[#allocation2 + $0x29] sm:$0x7f] %vm607, 0.0
        %610 = vst.msk [vmem:[#allocation2 + $0x41] sm:$0x7f] %vm607, 0.0
        %611 = vst.msk [vmem:[#allocation2 + $0x59] sm:$0x7f] %vm607, 0.0
        %612 = vst.msk [vmem:[#allocation2 + $0x71] sm:$0x7f] %vm607, 0.0
        %613 = vst.msk [vmem:[#allocation2 + $0x89] sm:$0x7f] %vm607, 0.0
        %614 = vst.msk [vmem:[#allocation2 + $0xa1] sm:$0x7f] %vm607, 0.0
        %615 = vst.msk [vmem:[#allocation2 + $0xb9] sm:$0x7f] %vm607, 0.0
        %616 = vst.msk [vmem:[#allocation2 + $0xd1] sm:$0x7f] %vm607, 0.0
        %617 = vst.msk [vmem:[#allocation2 + $0xe9] sm:$0x7f] %vm607, 0.0
        %618 = vst.msk [vmem:[#allocation2 + $0x101] sm:$0x7f] %vm607, 0.0
        %619 = vst.msk [vmem:[#allocation2 + $0x119] sm:$0x7f] %vm607, 0.0
        %620 = vst.msk [vmem:[#allocation2 + $0x131] sm:$0x7f] %vm607, 0.0
        %621 = vst.msk [vmem:[#allocation2 + $0x149] sm:$0x7f] %vm607, 0.0
        %622 = vst.msk [vmem:[#allocation2 + $0x161] sm:$0x7f] %vm607, 0.0
        %623 = vst.msk [vmem:[#allocation2 + $0x179] sm:$0x7f] %vm607, 0.0
        %624 = vst.msk [vmem:[#allocation2 + $0x191] sm:$0x7f] %vm607, 0.0
        %625 = vst.msk [vmem:[#allocation2 + $0x1a9] sm:$0x7f] %vm607, 0.0
        %s626 = scalar_lea.vmem [#allocation2], 24
        %627 = vst.msk [vmem:[%s626 + $0x1] sm:$0xff] %vm580, %v548
        %628 = vst.msk [vmem:[%s626 + $0x9] sm:$0xff] %vm580, %v549
        %629 = vst.msk [vmem:[%s626 + $0x19] sm:$0xff] %vm580, %v550
        %630 = vst.msk [vmem:[%s626 + $0x21] sm:$0xff] %vm580, %v551
        %631 = vst.msk [vmem:[%s626 + $0x31] sm:$0xff] %vm580, %v552
        %632 = vst.msk [vmem:[%s626 + $0x39] sm:$0xff] %vm580, %v553
        %633 = vst.msk [vmem:[%s626 + $0x49] sm:$0xff] %vm580, %v554
        %634 = vst.msk [vmem:[%s626 + $0x51] sm:$0xff] %vm580, %v555
        %635 = vst.msk [vmem:[%s626 + $0x61] sm:$0xff] %vm580, %v556
        %636 = vst.msk [vmem:[%s626 + $0x69] sm:$0xff] %vm580, %v557
        %637 = vst.msk [vmem:[%s626 + $0x79] sm:$0xff] %vm580, %v558
        %638 = vst.msk [vmem:[%s626 + $0x81] sm:$0xff] %vm580, %v559
        %639 = vst.msk [vmem:[%s626 + $0x91] sm:$0xff] %vm580, %v560
        %640 = vst.msk [vmem:[%s626 + $0x99] sm:$0xff] %vm580, %v561
        %641 = vst.msk [vmem:[%s626 + $0xa9] sm:$0xff] %vm580, %v562
        %642 = vst.msk [vmem:[%s626 + $0xb1] sm:$0xff] %vm580, %v563
        %643 = vst.msk [vmem:[%s626 + $0xc1] sm:$0xff] %vm580, %v564
        %644 = vst.msk [vmem:[%s626 + $0xc9] sm:$0xff] %vm580, %v565
        %645 = vst.msk [vmem:[%s626 + $0xd9] sm:$0xff] %vm580, %v566
        %646 = vst.msk [vmem:[%s626 + $0xe1] sm:$0xff] %vm580, %v567
        %647 = vst.msk [vmem:[%s626 + $0xf1] sm:$0xff] %vm580, %v568
        %648 = vst.msk [vmem:[%s626 + $0xf9] sm:$0xff] %vm580, %v569
        %649 = vst.msk [vmem:[%s626 + $0x109] sm:$0xff] %vm580, %v570
        %650 = vst.msk [vmem:[%s626 + $0x111] sm:$0xff] %vm580, %v571
        %651 = vst.msk [vmem:[%s626 + $0x121] sm:$0xff] %vm580, %v572
        %652 = vst.msk [vmem:[%s626 + $0x129] sm:$0xff] %vm580, %v573
        %653 = vst.msk [vmem:[%s626 + $0x139] sm:$0xff] %vm580, %v574
        %654 = vst.msk [vmem:[%s626 + $0x141] sm:$0xff] %vm580, %v575
        %655 = vst.msk [vmem:[%s626 + $0x151] sm:$0xff] %vm580, %v576
        %656 = vst.msk [vmem:[%s626 + $0x159] sm:$0xff] %vm580, %v577
        %657 = vst.msk [vmem:[%s626 + $0x169] sm:$0xff] %vm580, %v578
        %658 = vst.msk [vmem:[%s626 + $0x171] sm:$0xff] %vm580, %v579
        %v659 = vld [vmem:[#allocation2] sm:$0xff]
        %v660 = vld [vmem:[#allocation2 + $0x8] sm:$0xff]
        %v661 = vld [vmem:[#allocation2 + $0x18] sm:$0xff]
        %v662 = vld [vmem:[#allocation2 + $0x20] sm:$0xff]
        %v663 = vld [vmem:[#allocation2 + $0x30] sm:$0xff]
        %v664 = vld [vmem:[#allocation2 + $0x38] sm:$0xff]
        %v665 = vld [vmem:[#allocation2 + $0x48] sm:$0xff]
        %v666 = vld [vmem:[#allocation2 + $0x50] sm:$0xff]
        %v667 = vld [vmem:[#allocation2 + $0x60] sm:$0xff]
        %v668 = vld [vmem:[#allocation2 + $0x68] sm:$0xff]
        %v669 = vld [vmem:[#allocation2 + $0x78] sm:$0xff]
        %v670 = vld [vmem:[#allocation2 + $0x80] sm:$0xff]
        %v671 = vld [vmem:[#allocation2 + $0x90] sm:$0xff]
        %v672 = vld [vmem:[#allocation2 + $0x98] sm:$0xff]
        %v673 = vld [vmem:[#allocation2 + $0xa8] sm:$0xff]
        %v674 = vld [vmem:[#allocation2 + $0xb0] sm:$0xff]
        %v675 = vld [vmem:[#allocation2 + $0xc0] sm:$0xff]
        %v676 = vld [vmem:[#allocation2 + $0xc8] sm:$0xff]
        %v677 = vld [vmem:[#allocation2 + $0xd8] sm:$0xff]
        %v678 = vld [vmem:[#allocation2 + $0xe0] sm:$0xff]
        %v679 = vld [vmem:[#allocation2 + $0xf0] sm:$0xff]
        %v680 = vld [vmem:[#allocation2 + $0xf8] sm:$0xff]
        %v681 = vld [vmem:[#allocation2 + $0x108] sm:$0xff]
        %v682 = vld [vmem:[#allocation2 + $0x110] sm:$0xff]
        %v683 = vld [vmem:[#allocation2 + $0x120] sm:$0xff]
        %v684 = vld [vmem:[#allocation2 + $0x128] sm:$0xff]
        %v685 = vld [vmem:[#allocation2 + $0x138] sm:$0xff]
        %v686 = vld [vmem:[#allocation2 + $0x140] sm:$0xff]
        %v687 = vld [vmem:[#allocation2 + $0x150] sm:$0xff]
        %v688 = vld [vmem:[#allocation2 + $0x158] sm:$0xff]
        %v689 = vld [vmem:[#allocation2 + $0x168] sm:$0xff]
        %v690 = vld [vmem:[#allocation2 + $0x170] sm:$0xff]
        %v691 = vld [vmem:[%s3] sm:$0x1]
        %v693 = vlaneseq
        %v694 = vshrl.u32 %v693, 7
        %v695 = vsub.s32 0, %v694
        %v696 = vrot.slane %v691, %v695
        %v698 = vmul.f32 %v659, %v696
        %v699 = vmul.f32 %v660, %v696
        %v700 = vmul.f32 %v661, %v696
        %v701 = vmul.f32 %v662, %v696
        %v702 = vmul.f32 %v663, %v696
        %v703 = vmul.f32 %v664, %v696
        %v704 = vmul.f32 %v665, %v696
        %v705 = vmul.f32 %v666, %v696
        %v706 = vmul.f32 %v667, %v696
        %v707 = vmul.f32 %v668, %v696
        %v708 = vmul.f32 %v669, %v696
        %v709 = vmul.f32 %v670, %v696
        %v710 = vmul.f32 %v671, %v696
        %v711 = vmul.f32 %v672, %v696
        %v712 = vmul.f32 %v673, %v696
        %v713 = vmul.f32 %v674, %v696
        %v714 = vmul.f32 %v675, %v696
        %v715 = vmul.f32 %v676, %v696
        %v716 = vmul.f32 %v677, %v696
        %v717 = vmul.f32 %v678, %v696
        %v718 = vmul.f32 %v679, %v696
        %v719 = vmul.f32 %v680, %v696
        %v720 = vmul.f32 %v681, %v696
        %v721 = vmul.f32 %v682, %v696
        %v722 = vmul.f32 %v683, %v696
        %v723 = vmul.f32 %v684, %v696
        %v724 = vmul.f32 %v685, %v696
        %v725 = vmul.f32 %v686, %v696
        %v726 = vmul.f32 %v687, %v696
        %v727 = vmul.f32 %v688, %v696
        %v728 = vmul.f32 %v689, %v696
        %v729 = vmul.f32 %v690, %v696
        %v730 = vld [vmem:[#allocation2 + $0x1] sm:$0xff]
        %v731 = vld [vmem:[#allocation2 + $0x9] sm:$0xff]
        %v732 = vld [vmem:[#allocation2 + $0x19] sm:$0xff]
        %v733 = vld [vmem:[#allocation2 + $0x21] sm:$0xff]
        %v734 = vld [vmem:[#allocation2 + $0x31] sm:$0xff]
        %v735 = vld [vmem:[#allocation2 + $0x39] sm:$0xff]
        %v736 = vld [vmem:[#allocation2 + $0x49] sm:$0xff]
        %v737 = vld [vmem:[#allocation2 + $0x51] sm:$0xff]
        %v738 = vld [vmem:[#allocation2 + $0x61] sm:$0xff]
        %v739 = vld [vmem:[#allocation2 + $0x69] sm:$0xff]
        %v740 = vld [vmem:[#allocation2 + $0x79] sm:$0xff]
        %v741 = vld [vmem:[#allocation2 + $0x81] sm:$0xff]
        %v742 = vld [vmem:[#allocation2 + $0x91] sm:$0xff]
        %v743 = vld [vmem:[#allocation2 + $0x99] sm:$0xff]
        %v744 = vld [vmem:[#allocation2 + $0xa9] sm:$0xff]
        %v745 = vld [vmem:[#allocation2 + $0xb1] sm:$0xff]
        %v746 = vld [vmem:[#allocation2 + $0xc1] sm:$0xff]
        %v747 = vld [vmem:[#allocation2 + $0xc9] sm:$0xff]
        %v748 = vld [vmem:[#allocation2 + $0xd9] sm:$0xff]
        %v749 = vld [vmem:[#allocation2 + $0xe1] sm:$0xff]
        %v750 = vld [vmem:[#allocation2 + $0xf1] sm:$0xff]
        %v751 = vld [vmem:[#allocation2 + $0xf9] sm:$0xff]
        %v752 = vld [vmem:[#allocation2 + $0x109] sm:$0xff]
        %v753 = vld [vmem:[#allocation2 + $0x111] sm:$0xff]
        %v754 = vld [vmem:[#allocation2 + $0x121] sm:$0xff]
        %v755 = vld [vmem:[#allocation2 + $0x129] sm:$0xff]
        %v756 = vld [vmem:[#allocation2 + $0x139] sm:$0xff]
        %v757 = vld [vmem:[#allocation2 + $0x141] sm:$0xff]
        %v758 = vld [vmem:[#allocation2 + $0x151] sm:$0xff]
        %v759 = vld [vmem:[#allocation2 + $0x159] sm:$0xff]
        %v760 = vld [vmem:[#allocation2 + $0x169] sm:$0xff]
        %v761 = vld [vmem:[#allocation2 + $0x171] sm:$0xff]
        %s762 = scalar_lea.vmem %s3, 1
        %v763 = vld [vmem:[%s762] sm:$0x1]
        %v765 = vlaneseq
        %v766 = vshrl.u32 %v765, 7
        %v767 = vsub.s32 0, %v766
        %v768 = vrot.slane %v763, %v767
        %v770 = vmul.f32 %v730, %v768
        %v771 = vmul.f32 %v731, %v768
        %v772 = vmul.f32 %v732, %v768
        %v773 = vmul.f32 %v733, %v768
        %v774 = vmul.f32 %v734, %v768
        %v775 = vmul.f32 %v735, %v768
        %v776 = vmul.f32 %v736, %v768
        %v777 = vmul.f32 %v737, %v768
        %v778 = vmul.f32 %v738, %v768
        %v779 = vmul.f32 %v739, %v768
        %v780 = vmul.f32 %v740, %v768
        %v781 = vmul.f32 %v741, %v768
        %v782 = vmul.f32 %v742, %v768
        %v783 = vmul.f32 %v743, %v768
        %v784 = vmul.f32 %v744, %v768
        %v785 = vmul.f32 %v745, %v768
        %v786 = vmul.f32 %v746, %v768
        %v787 = vmul.f32 %v747, %v768
        %v788 = vmul.f32 %v748, %v768
        %v789 = vmul.f32 %v749, %v768
        %v790 = vmul.f32 %v750, %v768
        %v791 = vmul.f32 %v751, %v768
        %v792 = vmul.f32 %v752, %v768
        %v793 = vmul.f32 %v753, %v768
        %v794 = vmul.f32 %v754, %v768
        %v795 = vmul.f32 %v755, %v768
        %v796 = vmul.f32 %v756, %v768
        %v797 = vmul.f32 %v757, %v768
        %v798 = vmul.f32 %v758, %v768
        %v799 = vmul.f32 %v759, %v768
        %v800 = vmul.f32 %v760, %v768
        %v801 = vmul.f32 %v761, %v768
        %v802 = vadd.f32 %v698, %v770
        %v803 = vadd.f32 %v699, %v771
        %v804 = vadd.f32 %v700, %v772
        %v805 = vadd.f32 %v701, %v773
        %v806 = vadd.f32 %v702, %v774
        %v807 = vadd.f32 %v703, %v775
        %v808 = vadd.f32 %v704, %v776
        %v809 = vadd.f32 %v705, %v777
        %v810 = vadd.f32 %v706, %v778
        %v811 = vadd.f32 %v707, %v779
        %v812 = vadd.f32 %v708, %v780
        %v813 = vadd.f32 %v709, %v781
        %v814 = vadd.f32 %v710, %v782
        %v815 = vadd.f32 %v711, %v783
        %v816 = vadd.f32 %v712, %v784
        %v817 = vadd.f32 %v713, %v785
        %v818 = vadd.f32 %v714, %v786
        %v819 = vadd.f32 %v715, %v787
        %v820 = vadd.f32 %v716, %v788
        %v821 = vadd.f32 %v717, %v789
        %v822 = vadd.f32 %v718, %v790
        %v823 = vadd.f32 %v719, %v791
        %v824 = vadd.f32 %v720, %v792
        %v825 = vadd.f32 %v721, %v793
        %v826 = vadd.f32 %v722, %v794
        %v827 = vadd.f32 %v723, %v795
        %v828 = vadd.f32 %v724, %v796
        %v829 = vadd.f32 %v725, %v797
        %v830 = vadd.f32 %v726, %v798
        %v831 = vadd.f32 %v727, %v799
        %v832 = vadd.f32 %v728, %v800
        %v833 = vadd.f32 %v729, %v801
        %v834 = vld [vmem:[#allocation2 + $0x2] sm:$0xff]
        %v835 = vld [vmem:[#allocation2 + $0xa] sm:$0xff]
        %v836 = vld [vmem:[#allocation2 + $0x1a] sm:$0xff]
        %v837 = vld [vmem:[#allocation2 + $0x22] sm:$0xff]
        %v838 = vld [vmem:[#allocation2 + $0x32] sm:$0xff]
        %v839 = vld [vmem:[#allocation2 + $0x3a] sm:$0xff]
        %v840 = vld [vmem:[#allocation2 + $0x4a] sm:$0xff]
        %v841 = vld [vmem:[#allocation2 + $0x52] sm:$0xff]
        %v842 = vld [vmem:[#allocation2 + $0x62] sm:$0xff]
        %v843 = vld [vmem:[#allocation2 + $0x6a] sm:$0xff]
        %v844 = vld [vmem:[#allocation2 + $0x7a] sm:$0xff]
        %v845 = vld [vmem:[#allocation2 + $0x82] sm:$0xff]
        %v846 = vld [vmem:[#allocation2 + $0x92] sm:$0xff]
        %v847 = vld [vmem:[#allocation2 + $0x9a] sm:$0xff]
        %v848 = vld [vmem:[#allocation2 + $0xaa] sm:$0xff]
        %v849 = vld [vmem:[#allocation2 + $0xb2] sm:$0xff]
        %v850 = vld [vmem:[#allocation2 + $0xc2] sm:$0xff]
        %v851 = vld [vmem:[#allocation2 + $0xca] sm:$0xff]
        %v852 = vld [vmem:[#allocation2 + $0xda] sm:$0xff]
        %v853 = vld [vmem:[#allocation2 + $0xe2] sm:$0xff]
        %v854 = vld [vmem:[#allocation2 + $0xf2] sm:$0xff]
        %v855 = vld [vmem:[#allocation2 + $0xfa] sm:$0xff]
        %v856 = vld [vmem:[#allocation2 + $0x10a] sm:$0xff]
        %v857 = vld [vmem:[#allocation2 + $0x112] sm:$0xff]
        %v858 = vld [vmem:[#allocation2 + $0x122] sm:$0xff]
        %v859 = vld [vmem:[#allocation2 + $0x12a] sm:$0xff]
        %v860 = vld [vmem:[#allocation2 + $0x13a] sm:$0xff]
        %v861 = vld [vmem:[#allocation2 + $0x142] sm:$0xff]
        %v862 = vld [vmem:[#allocation2 + $0x152] sm:$0xff]
        %v863 = vld [vmem:[#allocation2 + $0x15a] sm:$0xff]
        %v864 = vld [vmem:[#allocation2 + $0x16a] sm:$0xff]
        %v865 = vld [vmem:[#allocation2 + $0x172] sm:$0xff]
        %s866 = scalar_lea.vmem %s3, 2
        %v867 = vld [vmem:[%s866] sm:$0x1]
        %v869 = vlaneseq
        %v870 = vshrl.u32 %v869, 7
        %v871 = vsub.s32 0, %v870
        %v872 = vrot.slane %v867, %v871
        %v874 = vmul.f32 %v834, %v872
        %v875 = vmul.f32 %v835, %v872
        %v876 = vmul.f32 %v836, %v872
        %v877 = vmul.f32 %v837, %v872
        %v878 = vmul.f32 %v838, %v872
        %v879 = vmul.f32 %v839, %v872
        %v880 = vmul.f32 %v840, %v872
        %v881 = vmul.f32 %v841, %v872
        %v882 = vmul.f32 %v842, %v872
        %v883 = vmul.f32 %v843, %v872
        %v884 = vmul.f32 %v844, %v872
        %v885 = vmul.f32 %v845, %v872
        %v886 = vmul.f32 %v846, %v872
        %v887 = vmul.f32 %v847, %v872
        %v888 = vmul.f32 %v848, %v872
        %v889 = vmul.f32 %v849, %v872
        %v890 = vmul.f32 %v850, %v872
        %v891 = vmul.f32 %v851, %v872
        %v892 = vmul.f32 %v852, %v872
        %v893 = vmul.f32 %v853, %v872
        %v894 = vmul.f32 %v854, %v872
        %v895 = vmul.f32 %v855, %v872
        %v896 = vmul.f32 %v856, %v872
        %v897 = vmul.f32 %v857, %v872
        %v898 = vmul.f32 %v858, %v872
        %v899 = vmul.f32 %v859, %v872
        %v900 = vmul.f32 %v860, %v872
        %v901 = vmul.f32 %v861, %v872
        %v902 = vmul.f32 %v862, %v872
        %v903 = vmul.f32 %v863, %v872
        %v904 = vmul.f32 %v864, %v872
        %v905 = vmul.f32 %v865, %v872
        %v906 = vadd.f32 %v802, %v874
        %v907 = vadd.f32 %v803, %v875
        %v908 = vadd.f32 %v804, %v876
        %v909 = vadd.f32 %v805, %v877
        %v910 = vadd.f32 %v806, %v878
        %v911 = vadd.f32 %v807, %v879
        %v912 = vadd.f32 %v808, %v880
        %v913 = vadd.f32 %v809, %v881
        %v914 = vadd.f32 %v810, %v882
        %v915 = vadd.f32 %v811, %v883
        %v916 = vadd.f32 %v812, %v884
        %v917 = vadd.f32 %v813, %v885
        %v918 = vadd.f32 %v814, %v886
        %v919 = vadd.f32 %v815, %v887
        %v920 = vadd.f32 %v816, %v888
        %v921 = vadd.f32 %v817, %v889
        %v922 = vadd.f32 %v818, %v890
        %v923 = vadd.f32 %v819, %v891
        %v924 = vadd.f32 %v820, %v892
        %v925 = vadd.f32 %v821, %v893
        %v926 = vadd.f32 %v822, %v894
        %v927 = vadd.f32 %v823, %v895
        %v928 = vadd.f32 %v824, %v896
        %v929 = vadd.f32 %v825, %v897
        %v930 = vadd.f32 %v826, %v898
        %v931 = vadd.f32 %v827, %v899
        %v932 = vadd.f32 %v828, %v900
        %v933 = vadd.f32 %v829, %v901
        %v934 = vadd.f32 %v830, %v902
        %v935 = vadd.f32 %v831, %v903
        %v936 = vadd.f32 %v832, %v904
        %v937 = vadd.f32 %v833, %v905
        %v938 = vld [vmem:[%s626] sm:$0xff]
        %v939 = vld [vmem:[%s626 + $0x8] sm:$0xff]
        %v940 = vld [vmem:[%s626 + $0x18] sm:$0xff]
        %v941 = vld [vmem:[%s626 + $0x20] sm:$0xff]
        %v942 = vld [vmem:[%s626 + $0x30] sm:$0xff]
        %v943 = vld [vmem:[%s626 + $0x38] sm:$0xff]
        %v944 = vld [vmem:[%s626 + $0x48] sm:$0xff]
        %v945 = vld [vmem:[%s626 + $0x50] sm:$0xff]
        %v946 = vld [vmem:[%s626 + $0x60] sm:$0xff]
        %v947 = vld [vmem:[%s626 + $0x68] sm:$0xff]
        %v948 = vld [vmem:[%s626 + $0x78] sm:$0xff]
        %v949 = vld [vmem:[%s626 + $0x80] sm:$0xff]
        %v950 = vld [vmem:[%s626 + $0x90] sm:$0xff]
        %v951 = vld [vmem:[%s626 + $0x98] sm:$0xff]
        %v952 = vld [vmem:[%s626 + $0xa8] sm:$0xff]
        %v953 = vld [vmem:[%s626 + $0xb0] sm:$0xff]
        %v954 = vld [vmem:[%s626 + $0xc0] sm:$0xff]
        %v955 = vld [vmem:[%s626 + $0xc8] sm:$0xff]
        %v956 = vld [vmem:[%s626 + $0xd8] sm:$0xff]
        %v957 = vld [vmem:[%s626 + $0xe0] sm:$0xff]
        %v958 = vld [vmem:[%s626 + $0xf0] sm:$0xff]
        %v959 = vld [vmem:[%s626 + $0xf8] sm:$0xff]
        %v960 = vld [vmem:[%s626 + $0x108] sm:$0xff]
        %v961 = vld [vmem:[%s626 + $0x110] sm:$0xff]
        %v962 = vld [vmem:[%s626 + $0x120] sm:$0xff]
        %v963 = vld [vmem:[%s626 + $0x128] sm:$0xff]
        %v964 = vld [vmem:[%s626 + $0x138] sm:$0xff]
        %v965 = vld [vmem:[%s626 + $0x140] sm:$0xff]
        %v966 = vld [vmem:[%s626 + $0x150] sm:$0xff]
        %v967 = vld [vmem:[%s626 + $0x158] sm:$0xff]
        %v968 = vld [vmem:[%s626 + $0x168] sm:$0xff]
        %v969 = vld [vmem:[%s626 + $0x170] sm:$0xff]
        %s970 = scalar_lea.vmem %s3, 3
        %v971 = vld [vmem:[%s970] sm:$0x1]
        %v973 = vlaneseq
        %v974 = vshrl.u32 %v973, 7
        %v975 = vsub.s32 0, %v974
        %v976 = vrot.slane %v971, %v975
        %v978 = vmul.f32 %v938, %v976
        %v979 = vmul.f32 %v939, %v976
        %v980 = vmul.f32 %v940, %v976
        %v981 = vmul.f32 %v941, %v976
        %v982 = vmul.f32 %v942, %v976
        %v983 = vmul.f32 %v943, %v976
        %v984 = vmul.f32 %v944, %v976
        %v985 = vmul.f32 %v945, %v976
        %v986 = vmul.f32 %v946, %v976
        %v987 = vmul.f32 %v947, %v976
        %v988 = vmul.f32 %v948, %v976
        %v989 = vmul.f32 %v949, %v976
        %v990 = vmul.f32 %v950, %v976
        %v991 = vmul.f32 %v951, %v976
        %v992 = vmul.f32 %v952, %v976
        %v993 = vmul.f32 %v953, %v976
        %v994 = vmul.f32 %v954, %v976
        %v995 = vmul.f32 %v955, %v976
        %v996 = vmul.f32 %v956, %v976
        %v997 = vmul.f32 %v957, %v976
        %v998 = vmul.f32 %v958, %v976
        %v999 = vmul.f32 %v959, %v976
        %v1000 = vmul.f32 %v960, %v976
        %v1001 = vmul.f32 %v961, %v976
        %v1002 = vmul.f32 %v962, %v976
        %v1003 = vmul.f32 %v963, %v976
        %v1004 = vmul.f32 %v964, %v976
        %v1005 = vmul.f32 %v965, %v976
        %v1006 = vmul.f32 %v966, %v976
        %v1007 = vmul.f32 %v967, %v976
        %v1008 = vmul.f32 %v968, %v976
        %v1009 = vmul.f32 %v969, %v976
        %v1010 = vld [vmem:[%s626 + $0x1] sm:$0xff]
        %v1011 = vld [vmem:[%s626 + $0x9] sm:$0xff]
        %v1012 = vld [vmem:[%s626 + $0x19] sm:$0xff]
        %v1013 = vld [vmem:[%s626 + $0x21] sm:$0xff]
        %v1014 = vld [vmem:[%s626 + $0x31] sm:$0xff]
        %v1015 = vld [vmem:[%s626 + $0x39] sm:$0xff]
        %v1016 = vld [vmem:[%s626 + $0x49] sm:$0xff]
        %v1017 = vld [vmem:[%s626 + $0x51] sm:$0xff]
        %v1018 = vld [vmem:[%s626 + $0x61] sm:$0xff]
        %v1019 = vld [vmem:[%s626 + $0x69] sm:$0xff]
        %v1020 = vld [vmem:[%s626 + $0x79] sm:$0xff]
        %v1021 = vld [vmem:[%s626 + $0x81] sm:$0xff]
        %v1022 = vld [vmem:[%s626 + $0x91] sm:$0xff]
        %v1023 = vld [vmem:[%s626 + $0x99] sm:$0xff]
        %v1024 = vld [vmem:[%s626 + $0xa9] sm:$0xff]
        %v1025 = vld [vmem:[%s626 + $0xb1] sm:$0xff]
        %v1026 = vld [vmem:[%s626 + $0xc1] sm:$0xff]
        %v1027 = vld [vmem:[%s626 + $0xc9] sm:$0xff]
        %v1028 = vld [vmem:[%s626 + $0xd9] sm:$0xff]
        %v1029 = vld [vmem:[%s626 + $0xe1] sm:$0xff]
        %v1030 = vld [vmem:[%s626 + $0xf1] sm:$0xff]
        %v1031 = vld [vmem:[%s626 + $0xf9] sm:$0xff]
        %v1032 = vld [vmem:[%s626 + $0x109] sm:$0xff]
        %v1033 = vld [vmem:[%s626 + $0x111] sm:$0xff]
        %v1034 = vld [vmem:[%s626 + $0x121] sm:$0xff]
        %v1035 = vld [vmem:[%s626 + $0x129] sm:$0xff]
        %v1036 = vld [vmem:[%s626 + $0x139] sm:$0xff]
        %v1037 = vld [vmem:[%s626 + $0x141] sm:$0xff]
        %v1038 = vld [vmem:[%s626 + $0x151] sm:$0xff]
        %v1039 = vld [vmem:[%s626 + $0x159] sm:$0xff]
        %v1040 = vld [vmem:[%s626 + $0x169] sm:$0xff]
        %v1041 = vld [vmem:[%s626 + $0x171] sm:$0xff]
        %s1042 = scalar_lea.vmem %s3, 4
        %v1043 = vld [vmem:[%s1042] sm:$0x1]
        %v1045 = vlaneseq
        %v1046 = vshrl.u32 %v1045, 7
        %v1047 = vsub.s32 0, %v1046
        %v1048 = vrot.slane %v1043, %v1047
        %v1050 = vmul.f32 %v1010, %v1048
        %v1051 = vmul.f32 %v1011, %v1048
        %v1052 = vmul.f32 %v1012, %v1048
        %v1053 = vmul.f32 %v1013, %v1048
        %v1054 = vmul.f32 %v1014, %v1048
        %v1055 = vmul.f32 %v1015, %v1048
        %v1056 = vmul.f32 %v1016, %v1048
        %v1057 = vmul.f32 %v1017, %v1048
        %v1058 = vmul.f32 %v1018, %v1048
        %v1059 = vmul.f32 %v1019, %v1048
        %v1060 = vmul.f32 %v1020, %v1048
        %v1061 = vmul.f32 %v1021, %v1048
        %v1062 = vmul.f32 %v1022, %v1048
        %v1063 = vmul.f32 %v1023, %v1048
        %v1064 = vmul.f32 %v1024, %v1048
        %v1065 = vmul.f32 %v1025, %v1048
        %v1066 = vmul.f32 %v1026, %v1048
        %v1067 = vmul.f32 %v1027, %v1048
        %v1068 = vmul.f32 %v1028, %v1048
        %v1069 = vmul.f32 %v1029, %v1048
        %v1070 = vmul.f32 %v1030, %v1048
        %v1071 = vmul.f32 %v1031, %v1048
        %v1072 = vmul.f32 %v1032, %v1048
        %v1073 = vmul.f32 %v1033, %v1048
        %v1074 = vmul.f32 %v1034, %v1048
        %v1075 = vmul.f32 %v1035, %v1048
        %v1076 = vmul.f32 %v1036, %v1048
        %v1077 = vmul.f32 %v1037, %v1048
        %v1078 = vmul.f32 %v1038, %v1048
        %v1079 = vmul.f32 %v1039, %v1048
        %v1080 = vmul.f32 %v1040, %v1048
        %v1081 = vmul.f32 %v1041, %v1048
        %v1082 = vadd.f32 %v978, %v1050
        %v1083 = vadd.f32 %v979, %v1051
        %v1084 = vadd.f32 %v980, %v1052
        %v1085 = vadd.f32 %v981, %v1053
        %v1086 = vadd.f32 %v982, %v1054
        %v1087 = vadd.f32 %v983, %v1055
        %v1088 = vadd.f32 %v984, %v1056
        %v1089 = vadd.f32 %v985, %v1057
        %v1090 = vadd.f32 %v986, %v1058
        %v1091 = vadd.f32 %v987, %v1059
        %v1092 = vadd.f32 %v988, %v1060
        %v1093 = vadd.f32 %v989, %v1061
        %v1094 = vadd.f32 %v990, %v1062
        %v1095 = vadd.f32 %v991, %v1063
        %v1096 = vadd.f32 %v992, %v1064
        %v1097 = vadd.f32 %v993, %v1065
        %v1098 = vadd.f32 %v994, %v1066
        %v1099 = vadd.f32 %v995, %v1067
        %v1100 = vadd.f32 %v996, %v1068
        %v1101 = vadd.f32 %v997, %v1069
        %v1102 = vadd.f32 %v998, %v1070
        %v1103 = vadd.f32 %v999, %v1071
        %v1104 = vadd.f32 %v1000, %v1072
        %v1105 = vadd.f32 %v1001, %v1073
        %v1106 = vadd.f32 %v1002, %v1074
        %v1107 = vadd.f32 %v1003, %v1075
        %v1108 = vadd.f32 %v1004, %v1076
        %v1109 = vadd.f32 %v1005, %v1077
        %v1110 = vadd.f32 %v1006, %v1078
        %v1111 = vadd.f32 %v1007, %v1079
        %v1112 = vadd.f32 %v1008, %v1080
        %v1113 = vadd.f32 %v1009, %v1081
        %v1114 = vld [vmem:[%s626 + $0x2] sm:$0xff]
        %v1115 = vld [vmem:[%s626 + $0xa] sm:$0xff]
        %v1116 = vld [vmem:[%s626 + $0x1a] sm:$0xff]
        %v1117 = vld [vmem:[%s626 + $0x22] sm:$0xff]
        %v1118 = vld [vmem:[%s626 + $0x32] sm:$0xff]
        %v1119 = vld [vmem:[%s626 + $0x3a] sm:$0xff]
        %v1120 = vld [vmem:[%s626 + $0x4a] sm:$0xff]
        %v1121 = vld [vmem:[%s626 + $0x52] sm:$0xff]
        %v1122 = vld [vmem:[%s626 + $0x62] sm:$0xff]
        %v1123 = vld [vmem:[%s626 + $0x6a] sm:$0xff]
        %v1124 = vld [vmem:[%s626 + $0x7a] sm:$0xff]
        %v1125 = vld [vmem:[%s626 + $0x82] sm:$0xff]
        %v1126 = vld [vmem:[%s626 + $0x92] sm:$0xff]
        %v1127 = vld [vmem:[%s626 + $0x9a] sm:$0xff]
        %v1128 = vld [vmem:[%s626 + $0xaa] sm:$0xff]
        %v1129 = vld [vmem:[%s626 + $0xb2] sm:$0xff]
        %v1130 = vld [vmem:[%s626 + $0xc2] sm:$0xff]
        %v1131 = vld [vmem:[%s626 + $0xca] sm:$0xff]
        %v1132 = vld [vmem:[%s626 + $0xda] sm:$0xff]
        %v1133 = vld [vmem:[%s626 + $0xe2] sm:$0xff]
        %v1134 = vld [vmem:[%s626 + $0xf2] sm:$0xff]
        %v1135 = vld [vmem:[%s626 + $0xfa] sm:$0xff]
        %v1136 = vld [vmem:[%s626 + $0x10a] sm:$0xff]
        %v1137 = vld [vmem:[%s626 + $0x112] sm:$0xff]
        %v1138 = vld [vmem:[%s626 + $0x122] sm:$0xff]
        %v1139 = vld [vmem:[%s626 + $0x12a] sm:$0xff]
        %v1140 = vld [vmem:[%s626 + $0x13a] sm:$0xff]
        %v1141 = vld [vmem:[%s626 + $0x142] sm:$0xff]
        %v1142 = vld [vmem:[%s626 + $0x152] sm:$0xff]
        %v1143 = vld [vmem:[%s626 + $0x15a] sm:$0xff]
        %v1144 = vld [vmem:[%s626 + $0x16a] sm:$0xff]
        %v1145 = vld [vmem:[%s626 + $0x172] sm:$0xff]
        %s1146 = scalar_lea.vmem %s3, 5
        %v1147 = vld [vmem:[%s1146] sm:$0x1]
        %v1149 = vlaneseq
        %v1150 = vshrl.u32 %v1149, 7
        %v1151 = vsub.s32 0, %v1150
        %v1152 = vrot.slane %v1147, %v1151
        %v1154 = vmul.f32 %v1114, %v1152
        %v1155 = vmul.f32 %v1115, %v1152
        %v1156 = vmul.f32 %v1116, %v1152
        %v1157 = vmul.f32 %v1117, %v1152
        %v1158 = vmul.f32 %v1118, %v1152
        %v1159 = vmul.f32 %v1119, %v1152
        %v1160 = vmul.f32 %v1120, %v1152
        %v1161 = vmul.f32 %v1121, %v1152
        %v1162 = vmul.f32 %v1122, %v1152
        %v1163 = vmul.f32 %v1123, %v1152
        %v1164 = vmul.f32 %v1124, %v1152
        %v1165 = vmul.f32 %v1125, %v1152
        %v1166 = vmul.f32 %v1126, %v1152
        %v1167 = vmul.f32 %v1127, %v1152
        %v1168 = vmul.f32 %v1128, %v1152
        %v1169 = vmul.f32 %v1129, %v1152
        %v1170 = vmul.f32 %v1130, %v1152
        %v1171 = vmul.f32 %v1131, %v1152
        %v1172 = vmul.f32 %v1132, %v1152
        %v1173 = vmul.f32 %v1133, %v1152
        %v1174 = vmul.f32 %v1134, %v1152
        %v1175 = vmul.f32 %v1135, %v1152
        %v1176 = vmul.f32 %v1136, %v1152
        %v1177 = vmul.f32 %v1137, %v1152
        %v1178 = vmul.f32 %v1138, %v1152
        %v1179 = vmul.f32 %v1139, %v1152
        %v1180 = vmul.f32 %v1140, %v1152
        %v1181 = vmul.f32 %v1141, %v1152
        %v1182 = vmul.f32 %v1142, %v1152
        %v1183 = vmul.f32 %v1143, %v1152
        %v1184 = vmul.f32 %v1144, %v1152
        %v1185 = vmul.f32 %v1145, %v1152
        %v1186 = vadd.f32 %v1082, %v1154
        %v1187 = vadd.f32 %v1083, %v1155
        %v1188 = vadd.f32 %v1084, %v1156
        %v1189 = vadd.f32 %v1085, %v1157
        %v1190 = vadd.f32 %v1086, %v1158
        %v1191 = vadd.f32 %v1087, %v1159
        %v1192 = vadd.f32 %v1088, %v1160
        %v1193 = vadd.f32 %v1089, %v1161
        %v1194 = vadd.f32 %v1090, %v1162
        %v1195 = vadd.f32 %v1091, %v1163
        %v1196 = vadd.f32 %v1092, %v1164
        %v1197 = vadd.f32 %v1093, %v1165
        %v1198 = vadd.f32 %v1094, %v1166
        %v1199 = vadd.f32 %v1095, %v1167
        %v1200 = vadd.f32 %v1096, %v1168
        %v1201 = vadd.f32 %v1097, %v1169
        %v1202 = vadd.f32 %v1098, %v1170
        %v1203 = vadd.f32 %v1099, %v1171
        %v1204 = vadd.f32 %v1100, %v1172
        %v1205 = vadd.f32 %v1101, %v1173
        %v1206 = vadd.f32 %v1102, %v1174
        %v1207 = vadd.f32 %v1103, %v1175
        %v1208 = vadd.f32 %v1104, %v1176
        %v1209 = vadd.f32 %v1105, %v1177
        %v1210 = vadd.f32 %v1106, %v1178
        %v1211 = vadd.f32 %v1107, %v1179
        %v1212 = vadd.f32 %v1108, %v1180
        %v1213 = vadd.f32 %v1109, %v1181
        %v1214 = vadd.f32 %v1110, %v1182
        %v1215 = vadd.f32 %v1111, %v1183
        %v1216 = vadd.f32 %v1112, %v1184
        %v1217 = vadd.f32 %v1113, %v1185
        %s1218 = scalar_lea.vmem [#allocation2], 48
        %v1219 = vld [vmem:[%s1218] sm:$0xff]
        %v1220 = vld [vmem:[%s1218 + $0x8] sm:$0xff]
        %v1221 = vld [vmem:[%s1218 + $0x18] sm:$0xff]
        %v1222 = vld [vmem:[%s1218 + $0x20] sm:$0xff]
        %v1223 = vld [vmem:[%s1218 + $0x30] sm:$0xff]
        %v1224 = vld [vmem:[%s1218 + $0x38] sm:$0xff]
        %v1225 = vld [vmem:[%s1218 + $0x48] sm:$0xff]
        %v1226 = vld [vmem:[%s1218 + $0x50] sm:$0xff]
        %v1227 = vld [vmem:[%s1218 + $0x60] sm:$0xff]
        %v1228 = vld [vmem:[%s1218 + $0x68] sm:$0xff]
        %v1229 = vld [vmem:[%s1218 + $0x78] sm:$0xff]
        %v1230 = vld [vmem:[%s1218 + $0x80] sm:$0xff]
        %v1231 = vld [vmem:[%s1218 + $0x90] sm:$0xff]
        %v1232 = vld [vmem:[%s1218 + $0x98] sm:$0xff]
        %v1233 = vld [vmem:[%s1218 + $0xa8] sm:$0xff]
        %v1234 = vld [vmem:[%s1218 + $0xb0] sm:$0xff]
        %v1235 = vld [vmem:[%s1218 + $0xc0] sm:$0xff]
        %v1236 = vld [vmem:[%s1218 + $0xc8] sm:$0xff]
        %v1237 = vld [vmem:[%s1218 + $0xd8] sm:$0xff]
        %v1238 = vld [vmem:[%s1218 + $0xe0] sm:$0xff]
        %v1239 = vld [vmem:[%s1218 + $0xf0] sm:$0xff]
        %v1240 = vld [vmem:[%s1218 + $0xf8] sm:$0xff]
        %v1241 = vld [vmem:[%s1218 + $0x108] sm:$0xff]
        %v1242 = vld [vmem:[%s1218 + $0x110] sm:$0xff]
        %v1243 = vld [vmem:[%s1218 + $0x120] sm:$0xff]
        %v1244 = vld [vmem:[%s1218 + $0x128] sm:$0xff]
        %v1245 = vld [vmem:[%s1218 + $0x138] sm:$0xff]
        %v1246 = vld [vmem:[%s1218 + $0x140] sm:$0xff]
        %v1247 = vld [vmem:[%s1218 + $0x150] sm:$0xff]
        %v1248 = vld [vmem:[%s1218 + $0x158] sm:$0xff]
        %v1249 = vld [vmem:[%s1218 + $0x168] sm:$0xff]
        %v1250 = vld [vmem:[%s1218 + $0x170] sm:$0xff]
        %s1251 = scalar_lea.vmem %s3, 6
        %v1252 = vld [vmem:[%s1251] sm:$0x1]
        %v1254 = vlaneseq
        %v1255 = vshrl.u32 %v1254, 7
        %v1256 = vsub.s32 0, %v1255
        %v1257 = vrot.slane %v1252, %v1256
        %v1259 = vmul.f32 %v1219, %v1257
        %v1260 = vmul.f32 %v1220, %v1257
        %v1261 = vmul.f32 %v1221, %v1257
        %v1262 = vmul.f32 %v1222, %v1257
        %v1263 = vmul.f32 %v1223, %v1257
        %v1264 = vmul.f32 %v1224, %v1257
        %v1265 = vmul.f32 %v1225, %v1257
        %v1266 = vmul.f32 %v1226, %v1257
        %v1267 = vmul.f32 %v1227, %v1257
        %v1268 = vmul.f32 %v1228, %v1257
        %v1269 = vmul.f32 %v1229, %v1257
        %v1270 = vmul.f32 %v1230, %v1257
        %v1271 = vmul.f32 %v1231, %v1257
        %v1272 = vmul.f32 %v1232, %v1257
        %v1273 = vmul.f32 %v1233, %v1257
        %v1274 = vmul.f32 %v1234, %v1257
        %v1275 = vmul.f32 %v1235, %v1257
        %v1276 = vmul.f32 %v1236, %v1257
        %v1277 = vmul.f32 %v1237, %v1257
        %v1278 = vmul.f32 %v1238, %v1257
        %v1279 = vmul.f32 %v1239, %v1257
        %v1280 = vmul.f32 %v1240, %v1257
        %v1281 = vmul.f32 %v1241, %v1257
        %v1282 = vmul.f32 %v1242, %v1257
        %v1283 = vmul.f32 %v1243, %v1257
        %v1284 = vmul.f32 %v1244, %v1257
        %v1285 = vmul.f32 %v1245, %v1257
        %v1286 = vmul.f32 %v1246, %v1257
        %v1287 = vmul.f32 %v1247, %v1257
        %v1288 = vmul.f32 %v1248, %v1257
        %v1289 = vmul.f32 %v1249, %v1257
        %v1290 = vmul.f32 %v1250, %v1257
        %v1291 = vld [vmem:[%s1218 + $0x1] sm:$0xff]
        %v1292 = vld [vmem:[%s1218 + $0x9] sm:$0xff]
        %v1293 = vld [vmem:[%s1218 + $0x19] sm:$0xff]
        %v1294 = vld [vmem:[%s1218 + $0x21] sm:$0xff]
        %v1295 = vld [vmem:[%s1218 + $0x31] sm:$0xff]
        %v1296 = vld [vmem:[%s1218 + $0x39] sm:$0xff]
        %v1297 = vld [vmem:[%s1218 + $0x49] sm:$0xff]
        %v1298 = vld [vmem:[%s1218 + $0x51] sm:$0xff]
        %v1299 = vld [vmem:[%s1218 + $0x61] sm:$0xff]
        %v1300 = vld [vmem:[%s1218 + $0x69] sm:$0xff]
        %v1301 = vld [vmem:[%s1218 + $0x79] sm:$0xff]
        %v1302 = vld [vmem:[%s1218 + $0x81] sm:$0xff]
        %v1303 = vld [vmem:[%s1218 + $0x91] sm:$0xff]
        %v1304 = vld [vmem:[%s1218 + $0x99] sm:$0xff]
        %v1305 = vld [vmem:[%s1218 + $0xa9] sm:$0xff]
        %v1306 = vld [vmem:[%s1218 + $0xb1] sm:$0xff]
        %v1307 = vld [vmem:[%s1218 + $0xc1] sm:$0xff]
        %v1308 = vld [vmem:[%s1218 + $0xc9] sm:$0xff]
        %v1309 = vld [vmem:[%s1218 + $0xd9] sm:$0xff]
        %v1310 = vld [vmem:[%s1218 + $0xe1] sm:$0xff]
        %v1311 = vld [vmem:[%s1218 + $0xf1] sm:$0xff]
        %v1312 = vld [vmem:[%s1218 + $0xf9] sm:$0xff]
        %v1313 = vld [vmem:[%s1218 + $0x109] sm:$0xff]
        %v1314 = vld [vmem:[%s1218 + $0x111] sm:$0xff]
        %v1315 = vld [vmem:[%s1218 + $0x121] sm:$0xff]
        %v1316 = vld [vmem:[%s1218 + $0x129] sm:$0xff]
        %v1317 = vld [vmem:[%s1218 + $0x139] sm:$0xff]
        %v1318 = vld [vmem:[%s1218 + $0x141] sm:$0xff]
        %v1319 = vld [vmem:[%s1218 + $0x151] sm:$0xff]
        %v1320 = vld [vmem:[%s1218 + $0x159] sm:$0xff]
        %v1321 = vld [vmem:[%s1218 + $0x169] sm:$0xff]
        %v1322 = vld [vmem:[%s1218 + $0x171] sm:$0xff]
        %s1323 = scalar_lea.vmem %s3, 7
        %v1324 = vld [vmem:[%s1323] sm:$0x1]
        %v1326 = vlaneseq
        %v1327 = vshrl.u32 %v1326, 7
        %v1328 = vsub.s32 0, %v1327
        %v1329 = vrot.slane %v1324, %v1328
        %v1331 = vmul.f32 %v1291, %v1329
        %v1332 = vmul.f32 %v1292, %v1329
        %v1333 = vmul.f32 %v1293, %v1329
        %v1334 = vmul.f32 %v1294, %v1329
        %v1335 = vmul.f32 %v1295, %v1329
        %v1336 = vmul.f32 %v1296, %v1329
        %v1337 = vmul.f32 %v1297, %v1329
        %v1338 = vmul.f32 %v1298, %v1329
        %v1339 = vmul.f32 %v1299, %v1329
        %v1340 = vmul.f32 %v1300, %v1329
        %v1341 = vmul.f32 %v1301, %v1329
        %v1342 = vmul.f32 %v1302, %v1329
        %v1343 = vmul.f32 %v1303, %v1329
        %v1344 = vmul.f32 %v1304, %v1329
        %v1345 = vmul.f32 %v1305, %v1329
        %v1346 = vmul.f32 %v1306, %v1329
        %v1347 = vmul.f32 %v1307, %v1329
        %v1348 = vmul.f32 %v1308, %v1329
        %v1349 = vmul.f32 %v1309, %v1329
        %v1350 = vmul.f32 %v1310, %v1329
        %v1351 = vmul.f32 %v1311, %v1329
        %v1352 = vmul.f32 %v1312, %v1329
        %v1353 = vmul.f32 %v1313, %v1329
        %v1354 = vmul.f32 %v1314, %v1329
        %v1355 = vmul.f32 %v1315, %v1329
        %v1356 = vmul.f32 %v1316, %v1329
        %v1357 = vmul.f32 %v1317, %v1329
        %v1358 = vmul.f32 %v1318, %v1329
        %v1359 = vmul.f32 %v1319, %v1329
        %v1360 = vmul.f32 %v1320, %v1329
        %v1361 = vmul.f32 %v1321, %v1329
        %v1362 = vmul.f32 %v1322, %v1329
        %v1363 = vadd.f32 %v1259, %v1331
        %v1364 = vadd.f32 %v1260, %v1332
        %v1365 = vadd.f32 %v1261, %v1333
        %v1366 = vadd.f32 %v1262, %v1334
        %v1367 = vadd.f32 %v1263, %v1335
        %v1368 = vadd.f32 %v1264, %v1336
        %v1369 = vadd.f32 %v1265, %v1337
        %v1370 = vadd.f32 %v1266, %v1338
        %v1371 = vadd.f32 %v1267, %v1339
        %v1372 = vadd.f32 %v1268, %v1340
        %v1373 = vadd.f32 %v1269, %v1341
        %v1374 = vadd.f32 %v1270, %v1342
        %v1375 = vadd.f32 %v1271, %v1343
        %v1376 = vadd.f32 %v1272, %v1344
        %v1377 = vadd.f32 %v1273, %v1345
        %v1378 = vadd.f32 %v1274, %v1346
        %v1379 = vadd.f32 %v1275, %v1347
        %v1380 = vadd.f32 %v1276, %v1348
        %v1381 = vadd.f32 %v1277, %v1349
        %v1382 = vadd.f32 %v1278, %v1350
        %v1383 = vadd.f32 %v1279, %v1351
        %v1384 = vadd.f32 %v1280, %v1352
        %v1385 = vadd.f32 %v1281, %v1353
        %v1386 = vadd.f32 %v1282, %v1354
        %v1387 = vadd.f32 %v1283, %v1355
        %v1388 = vadd.f32 %v1284, %v1356
        %v1389 = vadd.f32 %v1285, %v1357
        %v1390 = vadd.f32 %v1286, %v1358
        %v1391 = vadd.f32 %v1287, %v1359
        %v1392 = vadd.f32 %v1288, %v1360
        %v1393 = vadd.f32 %v1289, %v1361
        %v1394 = vadd.f32 %v1290, %v1362
        %v1395 = vld [vmem:[%s1218 + $0x2] sm:$0xff]
        %v1396 = vld [vmem:[%s1218 + $0xa] sm:$0xff]
        %v1397 = vld [vmem:[%s1218 + $0x1a] sm:$0xff]
        %v1398 = vld [vmem:[%s1218 + $0x22] sm:$0xff]
        %v1399 = vld [vmem:[%s1218 + $0x32] sm:$0xff]
        %v1400 = vld [vmem:[%s1218 + $0x3a] sm:$0xff]
        %v1401 = vld [vmem:[%s1218 + $0x4a] sm:$0xff]
        %v1402 = vld [vmem:[%s1218 + $0x52] sm:$0xff]
        %v1403 = vld [vmem:[%s1218 + $0x62] sm:$0xff]
        %v1404 = vld [vmem:[%s1218 + $0x6a] sm:$0xff]
        %v1405 = vld [vmem:[%s1218 + $0x7a] sm:$0xff]
        %v1406 = vld [vmem:[%s1218 + $0x82] sm:$0xff]
        %v1407 = vld [vmem:[%s1218 + $0x92] sm:$0xff]
        %v1408 = vld [vmem:[%s1218 + $0x9a] sm:$0xff]
        %v1409 = vld [vmem:[%s1218 + $0xaa] sm:$0xff]
        %v1410 = vld [vmem:[%s1218 + $0xb2] sm:$0xff]
        %v1411 = vld [vmem:[%s1218 + $0xc2] sm:$0xff]
        %v1412 = vld [vmem:[%s1218 + $0xca] sm:$0xff]
        %v1413 = vld [vmem:[%s1218 + $0xda] sm:$0xff]
        %v1414 = vld [vmem:[%s1218 + $0xe2] sm:$0xff]
        %v1415 = vld [vmem:[%s1218 + $0xf2] sm:$0xff]
        %v1416 = vld [vmem:[%s1218 + $0xfa] sm:$0xff]
        %v1417 = vld [vmem:[%s1218 + $0x10a] sm:$0xff]
        %v1418 = vld [vmem:[%s1218 + $0x112] sm:$0xff]
        %v1419 = vld [vmem:[%s1218 + $0x122] sm:$0xff]
        %v1420 = vld [vmem:[%s1218 + $0x12a] sm:$0xff]
        %v1421 = vld [vmem:[%s1218 + $0x13a] sm:$0xff]
        %v1422 = vld [vmem:[%s1218 + $0x142] sm:$0xff]
        %v1423 = vld [vmem:[%s1218 + $0x152] sm:$0xff]
        %v1424 = vld [vmem:[%s1218 + $0x15a] sm:$0xff]
        %v1425 = vld [vmem:[%s1218 + $0x16a] sm:$0xff]
        %v1426 = vld [vmem:[%s1218 + $0x172] sm:$0xff]
        %s1427 = scalar_lea.vmem %s3, 8
        %v1428 = vld [vmem:[%s1427] sm:$0x1]
        %v1430 = vlaneseq
        %v1431 = vshrl.u32 %v1430, 7
        %v1432 = vsub.s32 0, %v1431
        %v1433 = vrot.slane %v1428, %v1432
        %v1435 = vmul.f32 %v1395, %v1433
        %v1436 = vmul.f32 %v1396, %v1433
        %v1437 = vmul.f32 %v1397, %v1433
        %v1438 = vmul.f32 %v1398, %v1433
        %v1439 = vmul.f32 %v1399, %v1433
        %v1440 = vmul.f32 %v1400, %v1433
        %v1441 = vmul.f32 %v1401, %v1433
        %v1442 = vmul.f32 %v1402, %v1433
        %v1443 = vmul.f32 %v1403, %v1433
        %v1444 = vmul.f32 %v1404, %v1433
        %v1445 = vmul.f32 %v1405, %v1433
        %v1446 = vmul.f32 %v1406, %v1433
        %v1447 = vmul.f32 %v1407, %v1433
        %v1448 = vmul.f32 %v1408, %v1433
        %v1449 = vmul.f32 %v1409, %v1433
        %v1450 = vmul.f32 %v1410, %v1433
        %v1451 = vmul.f32 %v1411, %v1433
        %v1452 = vmul.f32 %v1412, %v1433
        %v1453 = vmul.f32 %v1413, %v1433
        %v1454 = vmul.f32 %v1414, %v1433
        %v1455 = vmul.f32 %v1415, %v1433
        %v1456 = vmul.f32 %v1416, %v1433
        %v1457 = vmul.f32 %v1417, %v1433
        %v1458 = vmul.f32 %v1418, %v1433
        %v1459 = vmul.f32 %v1419, %v1433
        %v1460 = vmul.f32 %v1420, %v1433
        %v1461 = vmul.f32 %v1421, %v1433
        %v1462 = vmul.f32 %v1422, %v1433
        %v1463 = vmul.f32 %v1423, %v1433
        %v1464 = vmul.f32 %v1424, %v1433
        %v1465 = vmul.f32 %v1425, %v1433
        %v1466 = vmul.f32 %v1426, %v1433
        %v1467 = vadd.f32 %v1363, %v1435
        %v1468 = vadd.f32 %v1364, %v1436
        %v1469 = vadd.f32 %v1365, %v1437
        %v1470 = vadd.f32 %v1366, %v1438
        %v1471 = vadd.f32 %v1367, %v1439
        %v1472 = vadd.f32 %v1368, %v1440
        %v1473 = vadd.f32 %v1369, %v1441
        %v1474 = vadd.f32 %v1370, %v1442
        %v1475 = vadd.f32 %v1371, %v1443
        %v1476 = vadd.f32 %v1372, %v1444
        %v1477 = vadd.f32 %v1373, %v1445
        %v1478 = vadd.f32 %v1374, %v1446
        %v1479 = vadd.f32 %v1375, %v1447
        %v1480 = vadd.f32 %v1376, %v1448
        %v1481 = vadd.f32 %v1377, %v1449
        %v1482 = vadd.f32 %v1378, %v1450
        %v1483 = vadd.f32 %v1379, %v1451
        %v1484 = vadd.f32 %v1380, %v1452
        %v1485 = vadd.f32 %v1381, %v1453
        %v1486 = vadd.f32 %v1382, %v1454
        %v1487 = vadd.f32 %v1383, %v1455
        %v1488 = vadd.f32 %v1384, %v1456
        %v1489 = vadd.f32 %v1385, %v1457
        %v1490 = vadd.f32 %v1386, %v1458
        %v1491 = vadd.f32 %v1387, %v1459
        %v1492 = vadd.f32 %v1388, %v1460
        %v1493 = vadd.f32 %v1389, %v1461
        %v1494 = vadd.f32 %v1390, %v1462
        %v1495 = vadd.f32 %v1391, %v1463
        %v1496 = vadd.f32 %v1392, %v1464
        %v1497 = vadd.f32 %v1393, %v1465
        %v1498 = vadd.f32 %v1394, %v1466
        %v1499 = vadd.f32 %v1186, %v1467
        %v1500 = vadd.f32 %v1187, %v1468
        %v1501 = vadd.f32 %v1188, %v1469
        %v1502 = vadd.f32 %v1189, %v1470
        %v1503 = vadd.f32 %v1190, %v1471
        %v1504 = vadd.f32 %v1191, %v1472
        %v1505 = vadd.f32 %v1192, %v1473
        %v1506 = vadd.f32 %v1193, %v1474
        %v1507 = vadd.f32 %v1194, %v1475
        %v1508 = vadd.f32 %v1195, %v1476
        %v1509 = vadd.f32 %v1196, %v1477
        %v1510 = vadd.f32 %v1197, %v1478
        %v1511 = vadd.f32 %v1198, %v1479
        %v1512 = vadd.f32 %v1199, %v1480
        %v1513 = vadd.f32 %v1200, %v1481
        %v1514 = vadd.f32 %v1201, %v1482
        %v1515 = vadd.f32 %v1202, %v1483
        %v1516 = vadd.f32 %v1203, %v1484
        %v1517 = vadd.f32 %v1204, %v1485
        %v1518 = vadd.f32 %v1205, %v1486
        %v1519 = vadd.f32 %v1206, %v1487
        %v1520 = vadd.f32 %v1207, %v1488
        %v1521 = vadd.f32 %v1208, %v1489
        %v1522 = vadd.f32 %v1209, %v1490
        %v1523 = vadd.f32 %v1210, %v1491
        %v1524 = vadd.f32 %v1211, %v1492
        %v1525 = vadd.f32 %v1212, %v1493
        %v1526 = vadd.f32 %v1213, %v1494
        %v1527 = vadd.f32 %v1214, %v1495
        %v1528 = vadd.f32 %v1215, %v1496
        %v1529 = vadd.f32 %v1216, %v1497
        %v1530 = vadd.f32 %v1217, %v1498
        %v1531 = vadd.f32 %v906, %v1499
        %v1532 = vadd.f32 %v907, %v1500
        %v1533 = vadd.f32 %v908, %v1501
        %v1534 = vadd.f32 %v909, %v1502
        %v1535 = vadd.f32 %v910, %v1503
        %v1536 = vadd.f32 %v911, %v1504
        %v1537 = vadd.f32 %v912, %v1505
        %v1538 = vadd.f32 %v913, %v1506
        %v1539 = vadd.f32 %v914, %v1507
        %v1540 = vadd.f32 %v915, %v1508
        %v1541 = vadd.f32 %v916, %v1509
        %v1542 = vadd.f32 %v917, %v1510
        %v1543 = vadd.f32 %v918, %v1511
        %v1544 = vadd.f32 %v919, %v1512
        %v1545 = vadd.f32 %v920, %v1513
        %v1546 = vadd.f32 %v921, %v1514
        %v1547 = vadd.f32 %v922, %v1515
        %v1548 = vadd.f32 %v923, %v1516
        %v1549 = vadd.f32 %v924, %v1517
        %v1550 = vadd.f32 %v925, %v1518
        %v1551 = vadd.f32 %v926, %v1519
        %v1552 = vadd.f32 %v927, %v1520
        %v1553 = vadd.f32 %v928, %v1521
        %v1554 = vadd.f32 %v929, %v1522
        %v1555 = vadd.f32 %v930, %v1523
        %v1556 = vadd.f32 %v931, %v1524
        %v1557 = vadd.f32 %v932, %v1525
        %v1558 = vadd.f32 %v933, %v1526
        %v1559 = vadd.f32 %v934, %v1527
        %v1560 = vadd.f32 %v935, %v1528
        %v1561 = vadd.f32 %v936, %v1529
        %v1562 = vadd.f32 %v937, %v1530
        %v1563 = vld [vmem:[%s4] sm:$0x1]
        %v1565 = vlaneseq
        %v1566 = vshrl.u32 %v1565, 7
        %v1567 = vsub.s32 0, %v1566
        %v1568 = vrot.slane %v1563, %v1567
        %v1570 = vadd.f32 %v1531, %v1568
        %v1571 = vadd.f32 %v1532, %v1568
        %v1572 = vadd.f32 %v1533, %v1568
        %v1573 = vadd.f32 %v1534, %v1568
        %v1574 = vadd.f32 %v1535, %v1568
        %v1575 = vadd.f32 %v1536, %v1568
        %v1576 = vadd.f32 %v1537, %v1568
        %v1577 = vadd.f32 %v1538, %v1568
        %v1578 = vadd.f32 %v1539, %v1568
        %v1579 = vadd.f32 %v1540, %v1568
        %v1580 = vadd.f32 %v1541, %v1568
        %v1581 = vadd.f32 %v1542, %v1568
        %v1582 = vadd.f32 %v1543, %v1568
        %v1583 = vadd.f32 %v1544, %v1568
        %v1584 = vadd.f32 %v1545, %v1568
        %v1585 = vadd.f32 %v1546, %v1568
        %v1586 = vadd.f32 %v1547, %v1568
        %v1587 = vadd.f32 %v1548, %v1568
        %v1588 = vadd.f32 %v1549, %v1568
        %v1589 = vadd.f32 %v1550, %v1568
        %v1590 = vadd.f32 %v1551, %v1568
        %v1591 = vadd.f32 %v1552, %v1568
        %v1592 = vadd.f32 %v1553, %v1568
        %v1593 = vadd.f32 %v1554, %v1568
        %v1594 = vadd.f32 %v1555, %v1568
        %v1595 = vadd.f32 %v1556, %v1568
        %v1596 = vadd.f32 %v1557, %v1568
        %v1597 = vadd.f32 %v1558, %v1568
        %v1598 = vadd.f32 %v1559, %v1568
        %v1599 = vadd.f32 %v1560, %v1568
        %v1600 = vadd.f32 %v1561, %v1568
        %v1601 = vadd.f32 %v1562, %v1568
        %v1602 = vpack.c.bf16 %v1571, %v1570
        %v1603 = vpack.c.bf16 %v1573, %v1572
        %v1604 = vpack.c.bf16 %v1575, %v1574
        %v1605 = vpack.c.bf16 %v1577, %v1576
        %v1606 = vpack.c.bf16 %v1579, %v1578
        %v1607 = vpack.c.bf16 %v1581, %v1580
        %v1608 = vpack.c.bf16 %v1583, %v1582
        %v1609 = vpack.c.bf16 %v1585, %v1584
        %v1610 = vpack.c.bf16 %v1587, %v1586
        %v1611 = vpack.c.bf16 %v1589, %v1588
        %v1612 = vpack.c.bf16 %v1591, %v1590
        %v1613 = vpack.c.bf16 %v1593, %v1592
        %v1614 = vpack.c.bf16 %v1595, %v1594
        %v1615 = vpack.c.bf16 %v1597, %v1596
        %v1616 = vpack.c.bf16 %v1599, %v1598
        %v1617 = vpack.c.bf16 %v1601, %v1600
        %1634 = vrot.lane.b32.xlu0 %v1602, 4
        %v1635 = vpop.permute.xlu0 %1634
        %1636 = vrot.lane.b32.xlu0 %v1603, 4
        %v1637 = vpop.permute.xlu0 %1636
        %1638 = vrot.lane.b32.xlu0 %v1604, 4
        %v1639 = vpop.permute.xlu0 %1638
        %1640 = vrot.lane.b32.xlu0 %v1605, 4
        %v1641 = vpop.permute.xlu0 %1640
        %1642 = vrot.lane.b32.xlu0 %v1606, 4
        %v1643 = vpop.permute.xlu0 %1642
        %1644 = vrot.lane.b32.xlu0 %v1607, 4
        %v1645 = vpop.permute.xlu0 %1644
        %1646 = vrot.lane.b32.xlu0 %v1608, 4
        %v1647 = vpop.permute.xlu0 %1646
        %1648 = vrot.lane.b32.xlu0 %v1609, 4
        %v1649 = vpop.permute.xlu0 %1648
        %1650 = vrot.lane.b32.xlu0 %v1610, 4
        %v1651 = vpop.permute.xlu0 %1650
        %1652 = vrot.lane.b32.xlu0 %v1611, 4
        %v1653 = vpop.permute.xlu0 %1652
        %1654 = vrot.lane.b32.xlu0 %v1612, 4
        %v1655 = vpop.permute.xlu0 %1654
        %1656 = vrot.lane.b32.xlu0 %v1613, 4
        %v1657 = vpop.permute.xlu0 %1656
        %1658 = vrot.lane.b32.xlu0 %v1614, 4
        %v1659 = vpop.permute.xlu0 %1658
        %1660 = vrot.lane.b32.xlu0 %v1615, 4
        %v1661 = vpop.permute.xlu0 %1660
        %1662 = vrot.lane.b32.xlu0 %v1616, 4
        %v1663 = vpop.permute.xlu0 %1662
        %1664 = vrot.lane.b32.xlu0 %v1617, 4
        %v1665 = vpop.permute.xlu0 %1664
        %v1667 = vsel %vm334, %v310, %v1635
        %v1669 = vsel %vm334, %v311, %v1637
        %v1671 = vsel %vm334, %v312, %v1639
        %v1673 = vsel %vm334, %v313, %v1641
        %v1675 = vsel %vm334, %v314, %v1643
        %v1677 = vsel %vm334, %v315, %v1645
        %v1679 = vsel %vm334, %v316, %v1647
        %v1681 = vsel %vm334, %v317, %v1649
        %v1683 = vsel %vm334, %v318, %v1651
        %v1685 = vsel %vm334, %v319, %v1653
        %v1687 = vsel %vm334, %v320, %v1655
        %v1689 = vsel %vm334, %v321, %v1657
        %v1691 = vsel %vm334, %v322, %v1659
        %v1693 = vsel %vm334, %v323, %v1661
        %v1695 = vsel %vm334, %v324, %v1663
        %v1697 = vsel %vm334, %v325, %v1665
        %v1698 = vld [vmem:[%s5] sm:$0x7]
        %v1699 = vld [vmem:[%s6] sm:$0x1]
        %v1701 = vlaneseq
        %v1702 = vshrl.u32 %v1701, 7
        %v1703 = vsub.s32 0, %v1702
        %v1704 = vrot.slane %v1699, %v1703
        %vm1706 = vcmask 48128
        %v1707 = vsel %vm1706, %v1667, 0
        %v1709 = vsel %vm1706, %v1669, 0
        %v1711 = vsel %vm1706, %v1671, 0
        %v1713 = vsel %vm1706, %v1673, 0
        %v1715 = vsel %vm1706, %v1675, 0
        %v1717 = vsel %vm1706, %v1677, 0
        %v1719 = vsel %vm1706, %v1679, 0
        %v1721 = vsel %vm1706, %v1681, 0
        %v1723 = vsel %vm1706, %v1683, 0
        %v1725 = vsel %vm1706, %v1685, 0
        %v1727 = vsel %vm1706, %v1687, 0
        %v1729 = vsel %vm1706, %v1689, 0
        %v1731 = vsel %vm1706, %v1691, 0
        %v1733 = vsel %vm1706, %v1693, 0
        %v1735 = vsel %vm1706, %v1695, 0
        %v1737 = vsel %vm1706, %v1697, 0
        %vm1739 = vcmask 1042432
        %v1741 = vsel %vm1739, %v1698, 0
        %1743 = vmatprep.subr.bf16.mxu0 0
        %1744 = vmatpush1.bf16.msra.mxu0 0
        %1745 = vmatprep.subr.bf16.mxu0 0
        %1746 = vmatpush1.bf16.msra.mxu0 0
        %1747 = vmatprep.subr.bf16.mxu0 0
        %1748 = vmatpush1.bf16.msra.mxu0 0
        %1749 = vmatprep.subr.bf16.mxu0 0
        %1750 = vmatpush1.bf16.msra.mxu0 0
        %1751 = vmatprep.subr.bf16.mxu0 0
        %1752 = vmatpush1.bf16.msra.mxu0 0
        %1753 = vmatprep.subr.bf16.mxu0 0
        %1754 = vmatpush1.bf16.msra.mxu0 0
        %1755 = vmatprep.subr.bf16.mxu0 0
        %1756 = vmatpush1.bf16.msra.mxu0 0
        %1757 = vmatprep.subr.bf16.mxu0 0
        %1758 = vmatpush1.bf16.msra.mxu0 %v1741
        %1759 = vmatprep.subr.bf16.mxu0 0
        %1760 = vmatpush2.bf16.msra.mxu0 0
        %1761 = vmatprep.subr.bf16.mxu0 0
        %1762 = vmatpush2.bf16.msra.mxu0 0
        %1763 = vmatprep.subr.bf16.mxu0 0
        %1764 = vmatpush2.bf16.msra.mxu0 0
        %1765 = vmatprep.subr.bf16.mxu0 0
        %1766 = vmatpush2.bf16.msra.mxu0 0
        %1767 = vmatprep.subr.bf16.mxu0 0
        %1768 = vmatpush2.bf16.msra.mxu0 0
        %1769 = vmatprep.subr.bf16.mxu0 0
        %1770 = vmatpush2.bf16.msra.mxu0 0
        %1771 = vmatprep.subr.bf16.mxu0 0
        %1772 = vmatpush2.bf16.msra.mxu0 0
        %1773 = vmatprep.subr.bf16.mxu0 0
        %1774 = vmatpush2.bf16.msra.mxu0 0
        %1775 = vmatprep.mubr.bf16.mxu0 0
        %1776 = vmatmul.mubr.bf16.gmra.mxu0 %v1707
        %v1777 = vpop.f32.mrf.mxu0
        %v1778 = vadd.f32 %v1704, %v1777
        %v1779 = vpop.f32.mrf.mxu0
        %v1780 = vpop.f32.mrf.mxu0
        %v1781 = vadd.f32 %v1704, %v1780
        %v1782 = vpop.f32.mrf.mxu0
        %1783 = vmatprep.mubr.bf16.mxu0 0
        %1784 = vmatmul.mubr.bf16.gmra.mxu0 %v1709
        %v1785 = vpop.f32.mrf.mxu0
        %v1786 = vadd.f32 %v1704, %v1785
        %v1787 = vpop.f32.mrf.mxu0
        %v1788 = vpop.f32.mrf.mxu0
        %v1789 = vadd.f32 %v1704, %v1788
        %v1790 = vpop.f32.mrf.mxu0
        %1791 = vmatprep.mubr.bf16.mxu0 0
        %1792 = vmatmul.mubr.bf16.gmra.mxu0 %v1711
        %v1793 = vpop.f32.mrf.mxu0
        %v1794 = vadd.f32 %v1704, %v1793
        %v1795 = vpop.f32.mrf.mxu0
        %v1796 = vpop.f32.mrf.mxu0
        %v1797 = vadd.f32 %v1704, %v1796
        %v1798 = vpop.f32.mrf.mxu0
        %1799 = vmatprep.mubr.bf16.mxu0 0
        %1800 = vmatmul.mubr.bf16.gmra.mxu0 %v1713
        %v1801 = vpop.f32.mrf.mxu0
        %v1802 = vadd.f32 %v1704, %v1801
        %v1803 = vpop.f32.mrf.mxu0
        %v1804 = vpop.f32.mrf.mxu0
        %v1805 = vadd.f32 %v1704, %v1804
        %v1806 = vpop.f32.mrf.mxu0
        %1807 = vmatprep.mubr.bf16.mxu0 0
        %1808 = vmatmul.mubr.bf16.gmra.mxu0 %v1715
        %v1809 = vpop.f32.mrf.mxu0
        %v1810 = vadd.f32 %v1704, %v1809
        %v1811 = vpop.f32.mrf.mxu0
        %v1812 = vpop.f32.mrf.mxu0
        %v1813 = vadd.f32 %v1704, %v1812
        %v1814 = vpop.f32.mrf.mxu0
        %1815 = vmatprep.mubr.bf16.mxu0 0
        %1816 = vmatmul.mubr.bf16.gmra.mxu0 %v1717
        %v1817 = vpop.f32.mrf.mxu0
        %v1818 = vadd.f32 %v1704, %v1817
        %v1819 = vpop.f32.mrf.mxu0
        %v1820 = vpop.f32.mrf.mxu0
        %v1821 = vadd.f32 %v1704, %v1820
        %v1822 = vpop.f32.mrf.mxu0
        %1823 = vmatprep.mubr.bf16.mxu0 0
        %1824 = vmatmul.mubr.bf16.gmra.mxu0 %v1719
        %v1825 = vpop.f32.mrf.mxu0
        %v1826 = vadd.f32 %v1704, %v1825
        %v1827 = vpop.f32.mrf.mxu0
        %v1828 = vpop.f32.mrf.mxu0
        %v1829 = vadd.f32 %v1704, %v1828
        %v1830 = vpop.f32.mrf.mxu0
        %1831 = vmatprep.mubr.bf16.mxu0 0
        %1832 = vmatmul.mubr.bf16.gmra.mxu0 %v1721
        %v1833 = vpop.f32.mrf.mxu0
        %v1834 = vadd.f32 %v1704, %v1833
        %v1835 = vpop.f32.mrf.mxu0
        %v1836 = vpop.f32.mrf.mxu0
        %v1837 = vadd.f32 %v1704, %v1836
        %v1838 = vpop.f32.mrf.mxu0
        %1839 = vmatprep.mubr.bf16.mxu0 0
        %1840 = vmatmul.mubr.bf16.gmra.mxu0 %v1723
        %v1841 = vpop.f32.mrf.mxu0
        %v1842 = vadd.f32 %v1704, %v1841
        %v1843 = vpop.f32.mrf.mxu0
        %v1844 = vpop.f32.mrf.mxu0
        %v1845 = vadd.f32 %v1704, %v1844
        %v1846 = vpop.f32.mrf.mxu0
        %1847 = vmatprep.mubr.bf16.mxu0 0
        %1848 = vmatmul.mubr.bf16.gmra.mxu0 %v1725
        %v1849 = vpop.f32.mrf.mxu0
        %v1850 = vadd.f32 %v1704, %v1849
        %v1851 = vpop.f32.mrf.mxu0
        %v1852 = vpop.f32.mrf.mxu0
        %v1853 = vadd.f32 %v1704, %v1852
        %v1854 = vpop.f32.mrf.mxu0
        %1855 = vmatprep.mubr.bf16.mxu0 0
        %1856 = vmatmul.mubr.bf16.gmra.mxu0 %v1727
        %v1857 = vpop.f32.mrf.mxu0
        %v1858 = vadd.f32 %v1704, %v1857
        %v1859 = vpop.f32.mrf.mxu0
        %v1860 = vpop.f32.mrf.mxu0
        %v1861 = vadd.f32 %v1704, %v1860
        %v1862 = vpop.f32.mrf.mxu0
        %1863 = vmatprep.mubr.bf16.mxu0 0
        %1864 = vmatmul.mubr.bf16.gmra.mxu0 %v1729
        %v1865 = vpop.f32.mrf.mxu0
        %v1866 = vadd.f32 %v1704, %v1865
        %v1867 = vpop.f32.mrf.mxu0
        %v1868 = vpop.f32.mrf.mxu0
        %v1869 = vadd.f32 %v1704, %v1868
        %v1870 = vpop.f32.mrf.mxu0
        %1871 = vmatprep.mubr.bf16.mxu0 0
        %1872 = vmatmul.mubr.bf16.gmra.mxu0 %v1731
        %v1873 = vpop.f32.mrf.mxu0
        %v1874 = vadd.f32 %v1704, %v1873
        %v1875 = vpop.f32.mrf.mxu0
        %v1876 = vpop.f32.mrf.mxu0
        %v1877 = vadd.f32 %v1704, %v1876
        %v1878 = vpop.f32.mrf.mxu0
        %1879 = vmatprep.mubr.bf16.mxu0 0
        %1880 = vmatmul.mubr.bf16.gmra.mxu0 %v1733
        %v1881 = vpop.f32.mrf.mxu0
        %v1882 = vadd.f32 %v1704, %v1881
        %v1883 = vpop.f32.mrf.mxu0
        %v1884 = vpop.f32.mrf.mxu0
        %v1885 = vadd.f32 %v1704, %v1884
        %v1886 = vpop.f32.mrf.mxu0
        %1887 = vmatprep.mubr.bf16.mxu0 0
        %1888 = vmatmul.mubr.bf16.gmra.mxu0 %v1735
        %v1889 = vpop.f32.mrf.mxu0
        %v1890 = vadd.f32 %v1704, %v1889
        %v1891 = vpop.f32.mrf.mxu0
        %v1892 = vpop.f32.mrf.mxu0
        %v1893 = vadd.f32 %v1704, %v1892
        %v1894 = vpop.f32.mrf.mxu0
        %1895 = vmatprep.mubr.bf16.mxu0 0
        %1896 = vmatmul.mubr.bf16.gmra.mxu0 %v1737
        %v1897 = vpop.f32.mrf.mxu0
        %v1898 = vadd.f32 %v1704, %v1897
        %v1899 = vpop.f32.mrf.mxu0
        %v1900 = vpop.f32.mrf.mxu0
        %v1901 = vadd.f32 %v1704, %v1900
        %v1902 = vpop.f32.mrf.mxu0
        %1903 = vdwg.mxu0
        %v1904 = vlaneseq
        %v1905 = vand.u32 %v1904, 127
        %vm1906 = vcmp.lt.s32.totalorder %v1905, 0
        %v1907 = vsub.s32 0, %v1905
        %v1908 = vsel %vm1906, %v1907, %v1905
        %v1909 = vshrl.u32 %v1908, 1
        %v1910 = vand.u32 %v1908, 1
        %v1911 = vsub.s32 0, %v1910
        %v1912 = vsel %vm1906, %v1911, %v1910
        %vm1913 = vcmp.ne.s32.totalorder %v1912, 0
        %vm1914 = vcmp.lt.s32.totalorder %v1912, 0
        %vm1915 = vmand %vm1914, %vm1913
        %v1916 = vadd.s32 %v1912, 2
        %v1917 = vsel %vm1915, %v1916, %v1912
        %vm1918 = vcmp.eq.s32.totalorder %v1917, 1
        %v1919 = vmax.f32 %v1778, 0.0
        %v1920 = vmax.f32 %v1781, 0.0
        %v1921 = vmax.f32 %v1786, 0.0
        %v1922 = vmax.f32 %v1789, 0.0
        %v1923 = vmax.f32 %v1794, 0.0
        %v1924 = vmax.f32 %v1797, 0.0
        %v1925 = vmax.f32 %v1802, 0.0
        %v1926 = vmax.f32 %v1805, 0.0
        %v1927 = vmax.f32 %v1810, 0.0
        %v1928 = vmax.f32 %v1813, 0.0
        %v1929 = vmax.f32 %v1818, 0.0
        %v1930 = vmax.f32 %v1821, 0.0
        %v1931 = vmax.f32 %v1826, 0.0
        %v1932 = vmax.f32 %v1829, 0.0
        %v1933 = vmax.f32 %v1834, 0.0
        %v1934 = vmax.f32 %v1837, 0.0
        %v1935 = vmax.f32 %v1842, 0.0
        %v1936 = vmax.f32 %v1845, 0.0
        %v1937 = vmax.f32 %v1850, 0.0
        %v1938 = vmax.f32 %v1853, 0.0
        %v1939 = vmax.f32 %v1858, 0.0
        %v1940 = vmax.f32 %v1861, 0.0
        %v1941 = vmax.f32 %v1866, 0.0
        %v1942 = vmax.f32 %v1869, 0.0
        %v1943 = vmax.f32 %v1874, 0.0
        %v1944 = vmax.f32 %v1877, 0.0
        %v1945 = vmax.f32 %v1882, 0.0
        %v1946 = vmax.f32 %v1885, 0.0
        %v1947 = vmax.f32 %v1890, 0.0
        %v1948 = vmax.f32 %v1893, 0.0
        %v1949 = vmax.f32 %v1898, 0.0
        %v1950 = vmax.f32 %v1901, 0.0
        %v1951 = vsel %vm1918, 1, 0
        %vm1952 = vcmp.eq.s32.totalorder %v1951, 1
        %v1953 = vsel %vm1952, %v1919, %v1778
        %v1954 = vsel %vm1952, %v1920, %v1781
        %v1955 = vsel %vm1952, %v1921, %v1786
        %v1956 = vsel %vm1952, %v1922, %v1789
        %v1957 = vsel %vm1952, %v1923, %v1794
        %v1958 = vsel %vm1952, %v1924, %v1797
        %v1959 = vsel %vm1952, %v1925, %v1802
        %v1960 = vsel %vm1952, %v1926, %v1805
        %v1961 = vsel %vm1952, %v1927, %v1810
        %v1962 = vsel %vm1952, %v1928, %v1813
        %v1963 = vsel %vm1952, %v1929, %v1818
        %v1964 = vsel %vm1952, %v1930, %v1821
        %v1965 = vsel %vm1952, %v1931, %v1826
        %v1966 = vsel %vm1952, %v1932, %v1829
        %v1967 = vsel %vm1952, %v1933, %v1834
        %v1968 = vsel %vm1952, %v1934, %v1837
        %v1969 = vsel %vm1952, %v1935, %v1842
        %v1970 = vsel %vm1952, %v1936, %v1845
        %v1971 = vsel %vm1952, %v1937, %v1850
        %v1972 = vsel %vm1952, %v1938, %v1853
        %v1973 = vsel %vm1952, %v1939, %v1858
        %v1974 = vsel %vm1952, %v1940, %v1861
        %v1975 = vsel %vm1952, %v1941, %v1866
        %v1976 = vsel %vm1952, %v1942, %v1869
        %v1977 = vsel %vm1952, %v1943, %v1874
        %v1978 = vsel %vm1952, %v1944, %v1877
        %v1979 = vsel %vm1952, %v1945, %v1882
        %v1980 = vsel %vm1952, %v1946, %v1885
        %v1981 = vsel %vm1952, %v1947, %v1890
        %v1982 = vsel %vm1952, %v1948, %v1893
        %v1983 = vsel %vm1952, %v1949, %v1898
        %v1984 = vsel %vm1952, %v1950, %v1901
        %1985 = vst [vmem:[%s271] sm:$0xff] %v1953
        %1986 = vst [vmem:[%s271 + $0x8] sm:$0xff] %v1954
        %1987 = vst [vmem:[%s271 + $0x10] sm:$0xff] %v1955
        %1988 = vst [vmem:[%s271 + $0x18] sm:$0xff] %v1956
        %1989 = vst [vmem:[%s271 + $0x20] sm:$0xff] %v1957
        %1990 = vst [vmem:[%s271 + $0x28] sm:$0xff] %v1958
        %1991 = vst [vmem:[%s271 + $0x30] sm:$0xff] %v1959
        %1992 = vst [vmem:[%s271 + $0x38] sm:$0xff] %v1960
        %1993 = vst [vmem:[%s271 + $0x40] sm:$0xff] %v1961
        %1994 = vst [vmem:[%s271 + $0x48] sm:$0xff] %v1962
        %1995 = vst [vmem:[%s271 + $0x50] sm:$0xff] %v1963
        %1996 = vst [vmem:[%s271 + $0x58] sm:$0xff] %v1964
        %1997 = vst [vmem:[%s271 + $0x60] sm:$0xff] %v1965
        %1998 = vst [vmem:[%s271 + $0x68] sm:$0xff] %v1966
        %1999 = vst [vmem:[%s271 + $0x70] sm:$0xff] %v1967
        %2000 = vst [vmem:[%s271 + $0x78] sm:$0xff] %v1968
        %2001 = vst [vmem:[%s271 + $0x80] sm:$0xff] %v1969
        %2002 = vst [vmem:[%s271 + $0x88] sm:$0xff] %v1970
        %2003 = vst [vmem:[%s271 + $0x90] sm:$0xff] %v1971
        %2004 = vst [vmem:[%s271 + $0x98] sm:$0xff] %v1972
        %2005 = vst [vmem:[%s271 + $0xa0] sm:$0xff] %v1973
        %2006 = vst [vmem:[%s271 + $0xa8] sm:$0xff] %v1974
        %2007 = vst [vmem:[%s271 + $0xb0] sm:$0xff] %v1975
        %2008 = vst [vmem:[%s271 + $0xb8] sm:$0xff] %v1976
        %2009 = vst [vmem:[%s271 + $0xc0] sm:$0xff] %v1977
        %2010 = vst [vmem:[%s271 + $0xc8] sm:$0xff] %v1978
        %2011 = vst [vmem:[%s271 + $0xd0] sm:$0xff] %v1979
        %2012 = vst [vmem:[%s271 + $0xd8] sm:$0xff] %v1980
        %2013 = vst [vmem:[%s271 + $0xe0] sm:$0xff] %v1981
        %2014 = vst [vmem:[%s271 + $0xe8] sm:$0xff] %v1982
        %2015 = vst [vmem:[%s271 + $0xf0] sm:$0xff] %v1983
        %2016 = vst [vmem:[%s271 + $0xf8] sm:$0xff] %v1984
        %s2017 = sand.u32 %s181, 1
        %s2018 = scalar_lea.sflag [#allocation4], %s2017
        %s2019 = sand.u32 %s181, 1
        %s2020 = smul.addr %s2019, 256
        %s2021 = scalar_lea.vmem [#allocation3], %s2020
        // Predicated region
        $region49: #{tpu_custom_call.1} parent=47 // pred_check
          %p2022 = pneg %p191
        $region50: #{tpu_custom_call.1} parent=47 // pred_check_branch
          %2024 = sbr.rel (%p2022) target = $region52
        $region51: #{tpu_custom_call.1} parent=47 // pred_region
          %s2026 = ssub.s32 4096, 4096
          %2027 = vsyncadd %s2018, %s2026
          %s2028 = smul.addr %s21, 32
          %s2029 = smul.addr %s2028, 128
          %s2030 = scalar_lea.hbm %s7, %s2029
          %s2031 = sshll.u32 %s2021, 4
          %s2032 = int_to_ptr.vmem [resolvable:$true] %s2031
          %2037 = dma.vmem_to_hbm [thread:$0]  %s2032, 4096, %s2030, %s2018, 128, 128, 8
        $region52: #{tpu_custom_call.1} parent=47 // pred_fallthru
          _
      $region48: #{tpu_custom_call.1} parent=5 // pred_fallthru
        _
      %p2038 = scmp.le.s32.totalorder 2, %s16
      // Predicated region
      $region53: #{tpu_custom_call.1} parent=5 // pred_check
        %p2039 = pneg %p2038
      $region54: #{tpu_custom_call.1} parent=5 // pred_check_branch
        %2041 = sbr.rel (%p2039) target = $region56
      $region55: #{tpu_custom_call.1} parent=5 // pred_region
        %s2042 = ssub.s32 %s16, 2
        // Predicated region
        $region57: #{tpu_custom_call.1} parent=55 // pred_check
          %p2043 = pneg %p197
        $region58: #{tpu_custom_call.1} parent=55 // pred_check_branch
          %2045 = sbr.rel (%p2043) target = $region60
        $region59: #{tpu_custom_call.1} parent=55 // pred_region
          %s2046 = sand.u32 %s182, 1
          %s2047 = scalar_lea.sflag [#allocation4], %s2046
          %s2048 = sand.u32 %s182, 1
          %s2049 = smul.addr %s2048, 256
          %s2050 = scalar_lea.vmem [#allocation3], %s2049
          %2051 = dma.done %s2047, 4096
        $region60: #{tpu_custom_call.1} parent=55 // pred_fallthru
          _
      $region56: #{tpu_custom_call.1} parent=5 // pred_fallthru
        _
    $region6: #{tpu_custom_call.1} parent=1 // loop_footer
      %s20 = sadd.s32 1, %s16
    $region7: #{tpu_custom_call.1} parent=1 // loop_footer_branch
      %15 = sbr.rel target = $region3
    $region8: #{tpu_custom_call.1} parent=1 // loop_exit
      _
    %2052 = vsyncpa [#allocation4], 1
    %s2053 = scalar_lea.sflag [#allocation4], 1
    %2054 = vsyncpa %s2053, 1

</llo_original>
